<compile_context>
chip_gen: v5e
topology: v5e:2x2
jax: 0.10.0
libtpu: 0.0.40
codegen_flags: <defaults>
</compile_context>

<pallas_src>
import jax
import jax.numpy as jnp
import numpy as np
from jax.experimental import pallas as pl
from jax.experimental.pallas import tpu as pltpu


def residual_bridge(x, dw1_w, dw1_b, pw1_w, pw1_b, dw2_w, dw2_b, pw2_w, pw2_b):
    """Forward pass of ResidualBridge (eval mode).

    x:      [B, Cin, H, W]
    dw1_w:  [Cin, 1, 3, 3]   dw1_b: [Cin]      (depthwise conv #1)
    pw1_w:  [Cout, Cin, 1, 1] pw1_b: [Cout]    (pointwise conv #1)
    dw2_w:  [Cout, 1, 3, 3]  dw2_b: [Cout]     (depthwise conv #2)
    pw2_w:  [Cout, Cout, 1, 1] pw2_b: [Cout]   (pointwise conv #2)
    returns [B, Cout, H, W]
    """
    B, Cin, H, W = x.shape
    Cout = pw1_w.shape[0]
    S = H * W
    # Left pad rounded up to a lane multiple => aligned interior store.
    PADL = ((W + 1 + 127) // 128) * 128
    PADR = W + 1
    Cmax = max(Cin, Cout)
    SPAD = PADL + S + PADR

    def kernel(x_ref, wm_ref,
               dw1_ref, db1_ref, pw1_ref, pb1_ref,
               dw2_ref, db2_ref, pw2_ref, pb2_ref,
               o_ref, pad_ref):
        # Zero the halo buffer every step (scratch is per-core; do NOT guard on
        # program_id == 0, the batch axis may be sharded across TensorCores).
        pad_ref[...] = jnp.zeros((Cmax, SPAD), jnp.float32)

        wm = wm_ref[...]  # [3, S] row-wrap masks for dw = -1, 0, +1

        def depthwise3x3(v, kt, bd):
            # v: [C, S] f32, kt: [C, 9], bd: [C, 1]
            C = v.shape[0]
            pad_ref[0:C, PADL:PADL + S] = v
            acc = jnp.zeros((C, S), jnp.float32)
            for dh in (-1, 0, 1):
                for dwc in (-1, 0, 1):
                    t = (dh + 1) * 3 + (dwc + 1)
                    off = dh * W + dwc
                    tap = pad_ref[0:C, PADL + off:PADL + off + S]
                    if dwc != 0:
                        tap = tap * wm[dwc + 1:dwc + 2, :]   # kill row-wrapped cols
                    acc = acc + tap * kt[:, t:t + 1]
            return acc + bd

        def pointwise(v, pw, pb):
            # v: [Ci, S], pw: [Co, Ci], pb: [Co, 1] -> [Co, S]
            Co, Ci = pw.shape
            acc = jnp.zeros((Co, S), jnp.float32)
            for c in range(Ci):
                acc = acc + pw[:, c:c + 1] * v[c:c + 1, :]   # VPU broadcast-FMA
            return acc + pb

        xv = x_ref[0].astype(jnp.float32)                    # [Cin, S]

        # depthwise_separable_conv #1
        h = depthwise3x3(xv, dw1_ref[...], db1_ref[...])
        h = pointwise(h, pw1_ref[...], pb1_ref[...])
        h = jnp.maximum(h, 0.0)                              # ReLU
        # TODO(synk): nn.Dropout(p=0.3) is identity in eval mode; training-mode
        # RNG masking (pltpu.prng_*) not implemented.

        # depthwise_separable_conv #2
        h = depthwise3x3(h, dw2_ref[...], db2_ref[...])
        h = pointwise(h, pw2_ref[...], pb2_ref[...])
        h = jnp.maximum(h, 0.0)                              # ReLU

        o_ref[0] = h.astype(o_ref.dtype)

    # --- wrapper-side (free) layout plumbing -------------------------------
    x_flat = x.reshape(B, Cin, S)

    # Row-wrap masks for the flattened-lane taps (dw = -1, 0, +1); static.
    wcol = np.arange(S) % W
    wmask = jnp.asarray(np.stack([
        (wcol >= 1),
        np.ones((S,), dtype=bool),
        (wcol <= W - 2),
    ]).astype(np.float32))

    k1 = dw1_w.reshape(Cin, 9).astype(jnp.float32)
    b1 = dw1_b.reshape(Cin, 1).astype(jnp.float32)
    p1 = pw1_w.reshape(Cout, Cin).astype(jnp.float32)
    q1 = pw1_b.reshape(Cout, 1).astype(jnp.float32)
    k2 = dw2_w.reshape(Cout, 9).astype(jnp.float32)
    b2 = dw2_b.reshape(Cout, 1).astype(jnp.float32)
    p2 = pw2_w.reshape(Cout, Cout).astype(jnp.float32)
    q2 = pw2_b.reshape(Cout, 1).astype(jnp.float32)

    out_flat = pl.pallas_call(
        kernel,
        out_shape=jax.ShapeDtypeStruct((B, Cout, S), x.dtype),
        grid_spec=pltpu.PrefetchScalarGridSpec(
            num_scalar_prefetch=0,
            grid=(B,),
            in_specs=[
                pl.BlockSpec((1, Cin, S), lambda b: (b, 0, 0)),   # x (per image)
                pl.BlockSpec((3, S), lambda b: (0, 0)),           # row-wrap masks
                pl.BlockSpec((Cin, 9), lambda b: (0, 0)),         # dw1 weight
                pl.BlockSpec((Cin, 1), lambda b: (0, 0)),         # dw1 bias
                pl.BlockSpec((Cout, Cin), lambda b: (0, 0)),      # pw1 weight
                pl.BlockSpec((Cout, 1), lambda b: (0, 0)),        # pw1 bias
                pl.BlockSpec((Cout, 9), lambda b: (0, 0)),        # dw2 weight
                pl.BlockSpec((Cout, 1), lambda b: (0, 0)),        # dw2 bias
                pl.BlockSpec((Cout, Cout), lambda b: (0, 0)),     # pw2 weight
                pl.BlockSpec((Cout, 1), lambda b: (0, 0)),        # pw2 bias
            ],
            out_specs=pl.BlockSpec((1, Cout, S), lambda b: (b, 0, 0)),
            scratch_shapes=[pltpu.VMEM((Cmax, SPAD), jnp.float32)],
        ),
        compiler_params=pltpu.CompilerParams(
            dimension_semantics=("parallel",),
        ),
    )(x_flat, wmask, k1, b1, p1, q1, k2, b2, p2, q2)

    return out_flat.reshape(B, Cout, H, W)


def _ref_forward(x, dw1_w, dw1_b, pw1_w, pw1_b, dw2_w, dw2_b, pw2_w, pw2_b):
    """Pure-JAX reference (eval-mode ResidualBridge)."""
    def ds(v, dw_w, dw_b, pw_w, pw_b, groups):
        y = jax.lax.conv_general_dilated(
            v, dw_w, (1, 1), "SAME",
            dimension_numbers=("NCHW", "OIHW", "NCHW"),
            feature_group_count=groups,
            precision=jax.lax.Precision.HIGHEST)
        y = y + dw_b[None, :, None, None]
        y = jax.lax.conv_general_dilated(
            y, pw_w, (1, 1), "SAME",
            dimension_numbers=("NCHW", "OIHW", "NCHW"),
            precision=jax.lax.Precision.HIGHEST)
        return y + pw_b[None, :, None, None]

    h = jnp.maximum(ds(x, dw1_w, dw1_b, pw1_w, pw1_b, x.shape[1]), 0.0)
    h = jnp.maximum(ds(h, dw2_w, dw2_b, pw2_w, pw2_b, h.shape[1]), 0.0)
    return h


if __name__ == "__main__":
    key = jax.random.PRNGKey(0)
    keys = jax.random.split(key, 9)

    B, Cin, Cout, H, W = 2, 4, 8, 16, 16
    x = jax.random.normal(keys[0], (B, Cin, H, W), dtype=jnp.float32)

    def uni(k, shape, fan_in):
        bound = 1.0 / (fan_in ** 0.5)
        return jax.random.uniform(k, shape, minval=-bound, maxval=bound,
                                  dtype=jnp.float32)

    # Mimic PyTorch Conv2d default (kaiming-uniform-ish) init ranges.
    dw1_w = uni(keys[1], (Cin, 1, 3, 3), 9)
    dw1_b = uni(keys[2], (Cin,), 9)
    pw1_w = uni(keys[3], (Cout, Cin, 1, 1), Cin)
    pw1_b = uni(keys[4], (Cout,), Cin)
    dw2_w = uni(keys[5], (Cout, 1, 3, 3), 9)
    dw2_b = uni(keys[6], (Cout,), 9)
    pw2_w = uni(keys[7], (Cout, Cout, 1, 1), Cout)
    pw2_b = uni(keys[8], (Cout,), Cout)

    out = residual_bridge(x, dw1_w, dw1_b, pw1_w, pw1_b,
                          dw2_w, dw2_b, pw2_w, pw2_b)
    out = jax.block_until_ready(out)
    assert out.shape == (B, Cout, H, W), out.shape

    ref = _ref_forward(x, dw1_w, dw1_b, pw1_w, pw1_b,
                       dw2_w, dw2_b, pw2_w, pw2_b)
    err = float(jnp.max(jnp.abs(out - ref)))
    assert jnp.allclose(out, ref, atol=1e-4, rtol=1e-4), err

    print("KERNEL_OK")
</pallas_src>

<mosaic_0001>
module attributes {stable_mosaic.version = 11 : i64} {
  func.func @kernel(%arg0: i32, %arg1: memref<1x4x256xf32, #tpu.memory_space<vmem>>, %arg2: memref<3x256xf32, #tpu.memory_space<vmem>>, %arg3: memref<4x9xf32, #tpu.memory_space<vmem>>, %arg4: memref<4x1xf32, #tpu.memory_space<vmem>>, %arg5: memref<8x4xf32, #tpu.memory_space<vmem>>, %arg6: memref<8x1xf32, #tpu.memory_space<vmem>>, %arg7: memref<8x9xf32, #tpu.memory_space<vmem>>, %arg8: memref<8x1xf32, #tpu.memory_space<vmem>>, %arg9: memref<8x8xf32, #tpu.memory_space<vmem>>, %arg10: memref<8x1xf32, #tpu.memory_space<vmem>>, %arg11: memref<1x8x256xf32, #tpu.memory_space<vmem>>, %arg12: memref<8x401xf32, #tpu.memory_space<vmem>>) attributes {dimension_semantics = [#tpu.dimension_semantics<parallel>], iteration_bounds = array<i64: 2>, scalar_prefetch = 0 : i64, scratch_operands = 1 : i64, tpu.core_type = #tpu.core_type<tc>, window_params = [{transform_indices = @transform_0, window_bounds = array<i64: 1, 4, 256>}, {pipeline_mode = #tpu.pipeline_mode<synchronous>, transform_indices = @transform_1, window_bounds = array<i64: 3, 256>}, {pipeline_mode = #tpu.pipeline_mode<synchronous>, transform_indices = @transform_2, window_bounds = array<i64: 4, 9>}, {pipeline_mode = #tpu.pipeline_mode<synchronous>, transform_indices = @transform_3, window_bounds = array<i64: 4, 1>}, {pipeline_mode = #tpu.pipeline_mode<synchronous>, transform_indices = @transform_4, window_bounds = array<i64: 8, 4>}, {pipeline_mode = #tpu.pipeline_mode<synchronous>, transform_indices = @transform_5, window_bounds = array<i64: 8, 1>}, {pipeline_mode = #tpu.pipeline_mode<synchronous>, transform_indices = @transform_6, window_bounds = array<i64: 8, 9>}, {pipeline_mode = #tpu.pipeline_mode<synchronous>, transform_indices = @transform_7, window_bounds = array<i64: 8, 1>}, {pipeline_mode = #tpu.pipeline_mode<synchronous>, transform_indices = @transform_8, window_bounds = array<i64: 8, 8>}, {pipeline_mode = #tpu.pipeline_mode<synchronous>, transform_indices = @transform_9, window_bounds = array<i64: 8, 1>}, {transform_indices = @transform_10, window_bounds = array<i64: 1, 8, 256>}]} {
    %cst = arith.constant 0.000000e+00 : f32
    %0 = vector.broadcast %cst : f32 to vector<8x401xf32>
    %c0 = arith.constant 0 : index
    %c0_0 = arith.constant 0 : index
    %1 = vector.load %arg12[%c0, %c0_0] : memref<8x401xf32, #tpu.memory_space<vmem>>, vector<8x401xf32>
    tpu.vector_store %arg12[%c0, %c0_0], %0 {strides = array<i32>} : memref<8x401xf32, #tpu.memory_space<vmem>>, vector<8x401xf32>,
    %c0_1 = arith.constant 0 : index
    %c0_2 = arith.constant 0 : index
    %2 = vector.load %arg2[%c0_1, %c0_2] : memref<3x256xf32, #tpu.memory_space<vmem>>, vector<3x256xf32>
    %c0_3 = arith.constant 0 : index
    %c0_4 = arith.constant 0 : index
    %c0_5 = arith.constant 0 : index
    %3 = vector.load %arg1[%c0_3, %c0_4, %c0_5] : memref<1x4x256xf32, #tpu.memory_space<vmem>>, vector<1x4x256xf32>
    %4 = vector.shape_cast %3 : vector<1x4x256xf32> to vector<4x256xf32>
    %c0_6 = arith.constant 0 : index
    %c0_7 = arith.constant 0 : index
    %5 = vector.load %arg3[%c0_6, %c0_7] : memref<4x9xf32, #tpu.memory_space<vmem>>, vector<4x9xf32>
    %c0_8 = arith.constant 0 : index
    %c0_9 = arith.constant 0 : index
    %6 = vector.load %arg4[%c0_8, %c0_9] : memref<4x1xf32, #tpu.memory_space<vmem>>, vector<4x1xf32>
    %c0_10 = arith.constant 0 : index
    %c128 = arith.constant 128 : index
    %7 = vector.load %arg12[%c0_10, %c128] : memref<8x401xf32, #tpu.memory_space<vmem>>, vector<4x256xf32>
    tpu.vector_store %arg12[%c0_10, %c128], %4 {strides = array<i32>} : memref<8x401xf32, #tpu.memory_space<vmem>>, vector<4x256xf32>,
    %cst_11 = arith.constant 0.000000e+00 : f32
    %8 = vector.broadcast %cst_11 : f32 to vector<4x256xf32>
    %c0_12 = arith.constant 0 : index
    %c111 = arith.constant 111 : index
    %9 = vector.load %arg12[%c0_12, %c111] : memref<8x401xf32, #tpu.memory_space<vmem>>, vector<4x256xf32>
    %10 = vector.extract_strided_slice %2 {offsets = [0, 0], sizes = [1, 256], strides = [1, 1]} : vector<3x256xf32> to vector<1x256xf32>
    %11 = vector.broadcast %10 : vector<1x256xf32> to vector<4x256xf32>
    %12 = arith.mulf %9, %11 : vector<4x256xf32>
    %13 = vector.extract_strided_slice %5 {offsets = [0, 0], sizes = [4, 1], strides = [1, 1]} : vector<4x9xf32> to vector<4x1xf32>
    %14 = vector.broadcast %13 : vector<4x1xf32> to vector<4x256xf32>
    %15 = arith.mulf %12, %14 : vector<4x256xf32>
    %16 = arith.addf %8, %15 : vector<4x256xf32>
    %c0_13 = arith.constant 0 : index
    %c112 = arith.constant 112 : index
    %17 = vector.load %arg12[%c0_13, %c112] : memref<8x401xf32, #tpu.memory_space<vmem>>, vector<4x256xf32>
    %18 = vector.extract_strided_slice %5 {offsets = [0, 1], sizes = [4, 1], strides = [1, 1]} : vector<4x9xf32> to vector<4x1xf32>
    %19 = vector.broadcast %18 : vector<4x1xf32> to vector<4x256xf32>
    %20 = arith.mulf %17, %19 : vector<4x256xf32>
    %21 = arith.addf %16, %20 : vector<4x256xf32>
    %c0_14 = arith.constant 0 : index
    %c113 = arith.constant 113 : index
    %22 = vector.load %arg12[%c0_14, %c113] : memref<8x401xf32, #tpu.memory_space<vmem>>, vector<4x256xf32>
    %23 = vector.extract_strided_slice %2 {offsets = [2, 0], sizes = [1, 256], strides = [1, 1]} : vector<3x256xf32> to vector<1x256xf32>
    %24 = vector.broadcast %23 : vector<1x256xf32> to vector<4x256xf32>
    %25 = arith.mulf %22, %24 : vector<4x256xf32>
    %26 = vector.extract_strided_slice %5 {offsets = [0, 2], sizes = [4, 1], strides = [1, 1]} : vector<4x9xf32> to vector<4x1xf32>
    %27 = vector.broadcast %26 : vector<4x1xf32> to vector<4x256xf32>
    %28 = arith.mulf %25, %27 : vector<4x256xf32>
    %29 = arith.addf %21, %28 : vector<4x256xf32>
    %c0_15 = arith.constant 0 : index
    %c127 = arith.constant 127 : index
    %30 = vector.load %arg12[%c0_15, %c127] : memref<8x401xf32, #tpu.memory_space<vmem>>, vector<4x256xf32>
    %31 = vector.extract_strided_slice %2 {offsets = [0, 0], sizes = [1, 256], strides = [1, 1]} : vector<3x256xf32> to vector<1x256xf32>
    %32 = vector.broadcast %31 : vector<1x256xf32> to vector<4x256xf32>
    %33 = arith.mulf %30, %32 : vector<4x256xf32>
    %34 = vector.extract_strided_slice %5 {offsets = [0, 3], sizes = [4, 1], strides = [1, 1]} : vector<4x9xf32> to vector<4x1xf32>
    %35 = vector.broadcast %34 : vector<4x1xf32> to vector<4x256xf32>
    %36 = arith.mulf %33, %35 : vector<4x256xf32>
    %37 = arith.addf %29, %36 : vector<4x256xf32>
    %c0_16 = arith.constant 0 : index
    %c128_17 = arith.constant 128 : index
    %38 = vector.load %arg12[%c0_16, %c128_17] : memref<8x401xf32, #tpu.memory_space<vmem>>, vector<4x256xf32>
    %39 = vector.extract_strided_slice %5 {offsets = [0, 4], sizes = [4, 1], strides = [1, 1]} : vector<4x9xf32> to vector<4x1xf32>
    %40 = vector.broadcast %39 : vector<4x1xf32> to vector<4x256xf32>
    %41 = arith.mulf %38, %40 : vector<4x256xf32>
    %42 = arith.addf %37, %41 : vector<4x256xf32>
    %c0_18 = arith.constant 0 : index
    %c129 = arith.constant 129 : index
    %43 = vector.load %arg12[%c0_18, %c129] : memref<8x401xf32, #tpu.memory_space<vmem>>, vector<4x256xf32>
    %44 = vector.extract_strided_slice %2 {offsets = [2, 0], sizes = [1, 256], strides = [1, 1]} : vector<3x256xf32> to vector<1x256xf32>
    %45 = vector.broadcast %44 : vector<1x256xf32> to vector<4x256xf32>
    %46 = arith.mulf %43, %45 : vector<4x256xf32>
    %47 = vector.extract_strided_slice %5 {offsets = [0, 5], sizes = [4, 1], strides = [1, 1]} : vector<4x9xf32> to vector<4x1xf32>
    %48 = vector.broadcast %47 : vector<4x1xf32> to vector<4x256xf32>
    %49 = arith.mulf %46, %48 : vector<4x256xf32>
    %50 = arith.addf %42, %49 : vector<4x256xf32>
    %c0_19 = arith.constant 0 : index
    %c143 = arith.constant 143 : index
    %51 = vector.load %arg12[%c0_19, %c143] : memref<8x401xf32, #tpu.memory_space<vmem>>, vector<4x256xf32>
    %52 = vector.extract_strided_slice %2 {offsets = [0, 0], sizes = [1, 256], strides = [1, 1]} : vector<3x256xf32> to vector<1x256xf32>
    %53 = vector.broadcast %52 : vector<1x256xf32> to vector<4x256xf32>
    %54 = arith.mulf %51, %53 : vector<4x256xf32>
    %55 = vector.extract_strided_slice %5 {offsets = [0, 6], sizes = [4, 1], strides = [1, 1]} : vector<4x9xf32> to vector<4x1xf32>
    %56 = vector.broadcast %55 : vector<4x1xf32> to vector<4x256xf32>
    %57 = arith.mulf %54, %56 : vector<4x256xf32>
    %58 = arith.addf %50, %57 : vector<4x256xf32>
    %c0_20 = arith.constant 0 : index
    %c144 = arith.constant 144 : index
    %59 = vector.load %arg12[%c0_20, %c144] : memref<8x401xf32, #tpu.memory_space<vmem>>, vector<4x256xf32>
    %60 = vector.extract_strided_slice %5 {offsets = [0, 7], sizes = [4, 1], strides = [1, 1]} : vector<4x9xf32> to vector<4x1xf32>
    %61 = vector.broadcast %60 : vector<4x1xf32> to vector<4x256xf32>
    %62 = arith.mulf %59, %61 : vector<4x256xf32>
    %63 = arith.addf %58, %62 : vector<4x256xf32>
    %c0_21 = arith.constant 0 : index
    %c145 = arith.constant 145 : index
    %64 = vector.load %arg12[%c0_21, %c145] : memref<8x401xf32, #tpu.memory_space<vmem>>, vector<4x256xf32>
    %65 = vector.extract_strided_slice %2 {offsets = [2, 0], sizes = [1, 256], strides = [1, 1]} : vector<3x256xf32> to vector<1x256xf32>
    %66 = vector.broadcast %65 : vector<1x256xf32> to vector<4x256xf32>
    %67 = arith.mulf %64, %66 : vector<4x256xf32>
    %68 = vector.extract_strided_slice %5 {offsets = [0, 8], sizes = [4, 1], strides = [1, 1]} : vector<4x9xf32> to vector<4x1xf32>
    %69 = vector.broadcast %68 : vector<4x1xf32> to vector<4x256xf32>
    %70 = arith.mulf %67, %69 : vector<4x256xf32>
    %71 = arith.addf %63, %70 : vector<4x256xf32>
    %72 = vector.broadcast %6 : vector<4x1xf32> to vector<4x256xf32>
    %73 = arith.addf %71, %72 : vector<4x256xf32>
    %c0_22 = arith.constant 0 : index
    %c0_23 = arith.constant 0 : index
    %74 = vector.load %arg5[%c0_22, %c0_23] : memref<8x4xf32, #tpu.memory_space<vmem>>, vector<8x4xf32>
    %c0_24 = arith.constant 0 : index
    %c0_25 = arith.constant 0 : index
    %75 = vector.load %arg6[%c0_24, %c0_25] : memref<8x1xf32, #tpu.memory_space<vmem>>, vector<8x1xf32>
    %cst_26 = arith.constant 0.000000e+00 : f32
    %76 = vector.broadcast %cst_26 : f32 to vector<8x256xf32>
    %77 = vector.extract_strided_slice %74 {offsets = [0, 0], sizes = [8, 1], strides = [1, 1]} : vector<8x4xf32> to vector<8x1xf32>
    %78 = vector.extract_strided_slice %73 {offsets = [0, 0], sizes = [1, 256], strides = [1, 1]} : vector<4x256xf32> to vector<1x256xf32>
    %79 = vector.broadcast %77 : vector<8x1xf32> to vector<8x256xf32>
    %80 = vector.broadcast %78 : vector<1x256xf32> to vector<8x256xf32>
    %81 = arith.mulf %79, %80 : vector<8x256xf32>
    %82 = arith.addf %76, %81 : vector<8x256xf32>
    %83 = vector.extract_strided_slice %74 {offsets = [0, 1], sizes = [8, 1], strides = [1, 1]} : vector<8x4xf32> to vector<8x1xf32>
    %84 = vector.extract_strided_slice %73 {offsets = [1, 0], sizes = [1, 256], strides = [1, 1]} : vector<4x256xf32> to vector<1x256xf32>
    %85 = vector.broadcast %83 : vector<8x1xf32> to vector<8x256xf32>
    %86 = vector.broadcast %84 : vector<1x256xf32> to vector<8x256xf32>
    %87 = arith.mulf %85, %86 : vector<8x256xf32>
    %88 = arith.addf %82, %87 : vector<8x256xf32>
    %89 = vector.extract_strided_slice %74 {offsets = [0, 2], sizes = [8, 1], strides = [1, 1]} : vector<8x4xf32> to vector<8x1xf32>
    %90 = vector.extract_strided_slice %73 {offsets = [2, 0], sizes = [1, 256], strides = [1, 1]} : vector<4x256xf32> to vector<1x256xf32>
    %91 = vector.broadcast %89 : vector<8x1xf32> to vector<8x256xf32>
    %92 = vector.broadcast %90 : vector<1x256xf32> to vector<8x256xf32>
    %93 = arith.mulf %91, %92 : vector<8x256xf32>
    %94 = arith.addf %88, %93 : vector<8x256xf32>
    %95 = vector.extract_strided_slice %74 {offsets = [0, 3], sizes = [8, 1], strides = [1, 1]} : vector<8x4xf32> to vector<8x1xf32>
    %96 = vector.extract_strided_slice %73 {offsets = [3, 0], sizes = [1, 256], strides = [1, 1]} : vector<4x256xf32> to vector<1x256xf32>
    %97 = vector.broadcast %95 : vector<8x1xf32> to vector<8x256xf32>
    %98 = vector.broadcast %96 : vector<1x256xf32> to vector<8x256xf32>
    %99 = arith.mulf %97, %98 : vector<8x256xf32>
    %100 = arith.addf %94, %99 : vector<8x256xf32>
    %101 = vector.broadcast %75 : vector<8x1xf32> to vector<8x256xf32>
    %102 = arith.addf %100, %101 : vector<8x256xf32>
    %cst_27 = arith.constant 0.000000e+00 : f32
    %103 = vector.broadcast %cst_27 : f32 to vector<8x256xf32>
    %104 = arith.maximumf %102, %103 : vector<8x256xf32>
    %c0_28 = arith.constant 0 : index
    %c0_29 = arith.constant 0 : index
    %105 = vector.load %arg7[%c0_28, %c0_29] : memref<8x9xf32, #tpu.memory_space<vmem>>, vector<8x9xf32>
    %c0_30 = arith.constant 0 : index
    %c0_31 = arith.constant 0 : index
    %106 = vector.load %arg8[%c0_30, %c0_31] : memref<8x1xf32, #tpu.memory_space<vmem>>, vector<8x1xf32>
    %c0_32 = arith.constant 0 : index
    %c128_33 = arith.constant 128 : index
    %107 = vector.load %arg12[%c0_32, %c128_33] : memref<8x401xf32, #tpu.memory_space<vmem>>, vector<8x256xf32>
    tpu.vector_store %arg12[%c0_32, %c128_33], %104 {strides = array<i32>} : memref<8x401xf32, #tpu.memory_space<vmem>>, vector<8x256xf32>,
    %cst_34 = arith.constant 0.000000e+00 : f32
    %108 = vector.broadcast %cst_34 : f32 to vector<8x256xf32>
    %c0_35 = arith.constant 0 : index
    %c111_36 = arith.constant 111 : index
    %109 = vector.load %arg12[%c0_35, %c111_36] : memref<8x401xf32, #tpu.memory_space<vmem>>, vector<8x256xf32>
    %110 = vector.extract_strided_slice %2 {offsets = [0, 0], sizes = [1, 256], strides = [1, 1]} : vector<3x256xf32> to vector<1x256xf32>
    %111 = vector.broadcast %110 : vector<1x256xf32> to vector<8x256xf32>
    %112 = arith.mulf %109, %111 : vector<8x256xf32>
    %113 = vector.extract_strided_slice %105 {offsets = [0, 0], sizes = [8, 1], strides = [1, 1]} : vector<8x9xf32> to vector<8x1xf32>
    %114 = vector.broadcast %113 : vector<8x1xf32> to vector<8x256xf32>
    %115 = arith.mulf %112, %114 : vector<8x256xf32>
    %116 = arith.addf %108, %115 : vector<8x256xf32>
    %c0_37 = arith.constant 0 : index
    %c112_38 = arith.constant 112 : index
    %117 = vector.load %arg12[%c0_37, %c112_38] : memref<8x401xf32, #tpu.memory_space<vmem>>, vector<8x256xf32>
    %118 = vector.extract_strided_slice %105 {offsets = [0, 1], sizes = [8, 1], strides = [1, 1]} : vector<8x9xf32> to vector<8x1xf32>
    %119 = vector.broadcast %118 : vector<8x1xf32> to vector<8x256xf32>
    %120 = arith.mulf %117, %119 : vector<8x256xf32>
    %121 = arith.addf %116, %120 : vector<8x256xf32>
    %c0_39 = arith.constant 0 : index
    %c113_40 = arith.constant 113 : index
    %122 = vector.load %arg12[%c0_39, %c113_40] : memref<8x401xf32, #tpu.memory_space<vmem>>, vector<8x256xf32>
    %123 = vector.extract_strided_slice %2 {offsets = [2, 0], sizes = [1, 256], strides = [1, 1]} : vector<3x256xf32> to vector<1x256xf32>
    %124 = vector.broadcast %123 : vector<1x256xf32> to vector<8x256xf32>
    %125 = arith.mulf %122, %124 : vector<8x256xf32>
    %126 = vector.extract_strided_slice %105 {offsets = [0, 2], sizes = [8, 1], strides = [1, 1]} : vector<8x9xf32> to vector<8x1xf32>
    %127 = vector.broadcast %126 : vector<8x1xf32> to vector<8x256xf32>
    %128 = arith.mulf %125, %127 : vector<8x256xf32>
    %129 = arith.addf %121, %128 : vector<8x256xf32>
    %c0_41 = arith.constant 0 : index
    %c127_42 = arith.constant 127 : index
    %130 = vector.load %arg12[%c0_41, %c127_42] : memref<8x401xf32, #tpu.memory_space<vmem>>, vector<8x256xf32>
    %131 = vector.extract_strided_slice %2 {offsets = [0, 0], sizes = [1, 256], strides = [1, 1]} : vector<3x256xf32> to vector<1x256xf32>
    %132 = vector.broadcast %131 : vector<1x256xf32> to vector<8x256xf32>
    %133 = arith.mulf %130, %132 : vector<8x256xf32>
    %134 = vector.extract_strided_slice %105 {offsets = [0, 3], sizes = [8, 1], strides = [1, 1]} : vector<8x9xf32> to vector<8x1xf32>
    %135 = vector.broadcast %134 : vector<8x1xf32> to vector<8x256xf32>
    %136 = arith.mulf %133, %135 : vector<8x256xf32>
    %137 = arith.addf %129, %136 : vector<8x256xf32>
    %c0_43 = arith.constant 0 : index
    %c128_44 = arith.constant 128 : index
    %138 = vector.load %arg12[%c0_43, %c128_44] : memref<8x401xf32, #tpu.memory_space<vmem>>, vector<8x256xf32>
    %139 = vector.extract_strided_slice %105 {offsets = [0, 4], sizes = [8, 1], strides = [1, 1]} : vector<8x9xf32> to vector<8x1xf32>
    %140 = vector.broadcast %139 : vector<8x1xf32> to vector<8x256xf32>
    %141 = arith.mulf %138, %140 : vector<8x256xf32>
    %142 = arith.addf %137, %141 : vector<8x256xf32>
    %c0_45 = arith.constant 0 : index
    %c129_46 = arith.constant 129 : index
    %143 = vector.load %arg12[%c0_45, %c129_46] : memref<8x401xf32, #tpu.memory_space<vmem>>, vector<8x256xf32>
    %144 = vector.extract_strided_slice %2 {offsets = [2, 0], sizes = [1, 256], strides = [1, 1]} : vector<3x256xf32> to vector<1x256xf32>
    %145 = vector.broadcast %144 : vector<1x256xf32> to vector<8x256xf32>
    %146 = arith.mulf %143, %145 : vector<8x256xf32>
    %147 = vector.extract_strided_slice %105 {offsets = [0, 5], sizes = [8, 1], strides = [1, 1]} : vector<8x9xf32> to vector<8x1xf32>
    %148 = vector.broadcast %147 : vector<8x1xf32> to vector<8x256xf32>
    %149 = arith.mulf %146, %148 : vector<8x256xf32>
    %150 = arith.addf %142, %149 : vector<8x256xf32>
    %c0_47 = arith.constant 0 : index
    %c143_48 = arith.constant 143 : index
    %151 = vector.load %arg12[%c0_47, %c143_48] : memref<8x401xf32, #tpu.memory_space<vmem>>, vector<8x256xf32>
    %152 = vector.extract_strided_slice %2 {offsets = [0, 0], sizes = [1, 256], strides = [1, 1]} : vector<3x256xf32> to vector<1x256xf32>
    %153 = vector.broadcast %152 : vector<1x256xf32> to vector<8x256xf32>
    %154 = arith.mulf %151, %153 : vector<8x256xf32>
    %155 = vector.extract_strided_slice %105 {offsets = [0, 6], sizes = [8, 1], strides = [1, 1]} : vector<8x9xf32> to vector<8x1xf32>
    %156 = vector.broadcast %155 : vector<8x1xf32> to vector<8x256xf32>
    %157 = arith.mulf %154, %156 : vector<8x256xf32>
    %158 = arith.addf %150, %157 : vector<8x256xf32>
    %c0_49 = arith.constant 0 : index
    %c144_50 = arith.constant 144 : index
    %159 = vector.load %arg12[%c0_49, %c144_50] : memref<8x401xf32, #tpu.memory_space<vmem>>, vector<8x256xf32>
    %160 = vector.extract_strided_slice %105 {offsets = [0, 7], sizes = [8, 1], strides = [1, 1]} : vector<8x9xf32> to vector<8x1xf32>
    %161 = vector.broadcast %160 : vector<8x1xf32> to vector<8x256xf32>
    %162 = arith.mulf %159, %161 : vector<8x256xf32>
    %163 = arith.addf %158, %162 : vector<8x256xf32>
    %c0_51 = arith.constant 0 : index
    %c145_52 = arith.constant 145 : index
    %164 = vector.load %arg12[%c0_51, %c145_52] : memref<8x401xf32, #tpu.memory_space<vmem>>, vector<8x256xf32>
    %165 = vector.extract_strided_slice %2 {offsets = [2, 0], sizes = [1, 256], strides = [1, 1]} : vector<3x256xf32> to vector<1x256xf32>
    %166 = vector.broadcast %165 : vector<1x256xf32> to vector<8x256xf32>
    %167 = arith.mulf %164, %166 : vector<8x256xf32>
    %168 = vector.extract_strided_slice %105 {offsets = [0, 8], sizes = [8, 1], strides = [1, 1]} : vector<8x9xf32> to vector<8x1xf32>
    %169 = vector.broadcast %168 : vector<8x1xf32> to vector<8x256xf32>
    %170 = arith.mulf %167, %169 : vector<8x256xf32>
    %171 = arith.addf %163, %170 : vector<8x256xf32>
    %172 = vector.broadcast %106 : vector<8x1xf32> to vector<8x256xf32>
    %173 = arith.addf %171, %172 : vector<8x256xf32>
    %c0_53 = arith.constant 0 : index
    %c0_54 = arith.constant 0 : index
    %174 = vector.load %arg9[%c0_53, %c0_54] : memref<8x8xf32, #tpu.memory_space<vmem>>, vector<8x8xf32>
    %c0_55 = arith.constant 0 : index
    %c0_56 = arith.constant 0 : index
    %175 = vector.load %arg10[%c0_55, %c0_56] : memref<8x1xf32, #tpu.memory_space<vmem>>, vector<8x1xf32>
    %cst_57 = arith.constant 0.000000e+00 : f32
    %176 = vector.broadcast %cst_57 : f32 to vector<8x256xf32>
    %177 = vector.extract_strided_slice %174 {offsets = [0, 0], sizes = [8, 1], strides = [1, 1]} : vector<8x8xf32> to vector<8x1xf32>
    %178 = vector.extract_strided_slice %173 {offsets = [0, 0], sizes = [1, 256], strides = [1, 1]} : vector<8x256xf32> to vector<1x256xf32>
    %179 = vector.broadcast %177 : vector<8x1xf32> to vector<8x256xf32>
    %180 = vector.broadcast %178 : vector<1x256xf32> to vector<8x256xf32>
    %181 = arith.mulf %179, %180 : vector<8x256xf32>
    %182 = arith.addf %176, %181 : vector<8x256xf32>
    %183 = vector.extract_strided_slice %174 {offsets = [0, 1], sizes = [8, 1], strides = [1, 1]} : vector<8x8xf32> to vector<8x1xf32>
    %184 = vector.extract_strided_slice %173 {offsets = [1, 0], sizes = [1, 256], strides = [1, 1]} : vector<8x256xf32> to vector<1x256xf32>
    %185 = vector.broadcast %183 : vector<8x1xf32> to vector<8x256xf32>
    %186 = vector.broadcast %184 : vector<1x256xf32> to vector<8x256xf32>
    %187 = arith.mulf %185, %186 : vector<8x256xf32>
    %188 = arith.addf %182, %187 : vector<8x256xf32>
    %189 = vector.extract_strided_slice %174 {offsets = [0, 2], sizes = [8, 1], strides = [1, 1]} : vector<8x8xf32> to vector<8x1xf32>
    %190 = vector.extract_strided_slice %173 {offsets = [2, 0], sizes = [1, 256], strides = [1, 1]} : vector<8x256xf32> to vector<1x256xf32>
    %191 = vector.broadcast %189 : vector<8x1xf32> to vector<8x256xf32>
    %192 = vector.broadcast %190 : vector<1x256xf32> to vector<8x256xf32>
    %193 = arith.mulf %191, %192 : vector<8x256xf32>
    %194 = arith.addf %188, %193 : vector<8x256xf32>
    %195 = vector.extract_strided_slice %174 {offsets = [0, 3], sizes = [8, 1], strides = [1, 1]} : vector<8x8xf32> to vector<8x1xf32>
    %196 = vector.extract_strided_slice %173 {offsets = [3, 0], sizes = [1, 256], strides = [1, 1]} : vector<8x256xf32> to vector<1x256xf32>
    %197 = vector.broadcast %195 : vector<8x1xf32> to vector<8x256xf32>
    %198 = vector.broadcast %196 : vector<1x256xf32> to vector<8x256xf32>
    %199 = arith.mulf %197, %198 : vector<8x256xf32>
    %200 = arith.addf %194, %199 : vector<8x256xf32>
    %201 = vector.extract_strided_slice %174 {offsets = [0, 4], sizes = [8, 1], strides = [1, 1]} : vector<8x8xf32> to vector<8x1xf32>
    %202 = vector.extract_strided_slice %173 {offsets = [4, 0], sizes = [1, 256], strides = [1, 1]} : vector<8x256xf32> to vector<1x256xf32>
    %203 = vector.broadcast %201 : vector<8x1xf32> to vector<8x256xf32>
    %204 = vector.broadcast %202 : vector<1x256xf32> to vector<8x256xf32>
    %205 = arith.mulf %203, %204 : vector<8x256xf32>
    %206 = arith.addf %200, %205 : vector<8x256xf32>
    %207 = vector.extract_strided_slice %174 {offsets = [0, 5], sizes = [8, 1], strides = [1, 1]} : vector<8x8xf32> to vector<8x1xf32>
    %208 = vector.extract_strided_slice %173 {offsets = [5, 0], sizes = [1, 256], strides = [1, 1]} : vector<8x256xf32> to vector<1x256xf32>
    %209 = vector.broadcast %207 : vector<8x1xf32> to vector<8x256xf32>
    %210 = vector.broadcast %208 : vector<1x256xf32> to vector<8x256xf32>
    %211 = arith.mulf %209, %210 : vector<8x256xf32>
    %212 = arith.addf %206, %211 : vector<8x256xf32>
    %213 = vector.extract_strided_slice %174 {offsets = [0, 6], sizes = [8, 1], strides = [1, 1]} : vector<8x8xf32> to vector<8x1xf32>
    %214 = vector.extract_strided_slice %173 {offsets = [6, 0], sizes = [1, 256], strides = [1, 1]} : vector<8x256xf32> to vector<1x256xf32>
    %215 = vector.broadcast %213 : vector<8x1xf32> to vector<8x256xf32>
    %216 = vector.broadcast %214 : vector<1x256xf32> to vector<8x256xf32>
    %217 = arith.mulf %215, %216 : vector<8x256xf32>
    %218 = arith.addf %212, %217 : vector<8x256xf32>
    %219 = vector.extract_strided_slice %174 {offsets = [0, 7], sizes = [8, 1], strides = [1, 1]} : vector<8x8xf32> to vector<8x1xf32>
    %220 = vector.extract_strided_slice %173 {offsets = [7, 0], sizes = [1, 256], strides = [1, 1]} : vector<8x256xf32> to vector<1x256xf32>
    %221 = vector.broadcast %219 : vector<8x1xf32> to vector<8x256xf32>
    %222 = vector.broadcast %220 : vector<1x256xf32> to vector<8x256xf32>
    %223 = arith.mulf %221, %222 : vector<8x256xf32>
    %224 = arith.addf %218, %223 : vector<8x256xf32>
    %225 = vector.broadcast %175 : vector<8x1xf32> to vector<8x256xf32>
    %226 = arith.addf %224, %225 : vector<8x256xf32>
    %cst_58 = arith.constant 0.000000e+00 : f32
    %227 = vector.broadcast %cst_58 : f32 to vector<8x256xf32>
    %228 = arith.maximumf %226, %227 : vector<8x256xf32>
    %c0_59 = arith.constant 0 : index
    %c0_60 = arith.constant 0 : index
    %c0_61 = arith.constant 0 : index
    %229 = vector.load %arg11[%c0_59, %c0_60, %c0_61] : memref<1x8x256xf32, #tpu.memory_space<vmem>>, vector<1x8x256xf32>
    %230 = vector.shape_cast %229 : vector<1x8x256xf32> to vector<8x256xf32>
    %231 = vector.shape_cast %228 : vector<8x256xf32> to vector<1x8x256xf32>
    tpu.vector_store %arg11[%c0_59, %c0_60, %c0_61], %231 {strides = array<i32>} : memref<1x8x256xf32, #tpu.memory_space<vmem>>, vector<1x8x256xf32>,
    return
  }
  func.func @transform_0(%arg0: i32) -> (i32, i32, i32) {
    %c0_i32 = arith.constant 0 : i32
    %c0_i32_0 = arith.constant 0 : i32
    %c0_i32_1 = arith.constant 0 : i32
    return %arg0, %c0_i32, %c0_i32_0 : i32, i32, i32
  }
  func.func @transform_1(%arg0: i32) -> (i32, i32) {
    %c0_i32 = arith.constant 0 : i32
    %c0_i32_0 = arith.constant 0 : i32
    %c0_i32_1 = arith.constant 0 : i32
    return %c0_i32, %c0_i32_0 : i32, i32
  }
  func.func @transform_2(%arg0: i32) -> (i32, i32) {
    %c0_i32 = arith.constant 0 : i32
    %c0_i32_0 = arith.constant 0 : i32
    %c0_i32_1 = arith.constant 0 : i32
    return %c0_i32, %c0_i32_0 : i32, i32
  }
  func.func @transform_3(%arg0: i32) -> (i32, i32) {
    %c0_i32 = arith.constant 0 : i32
    %c0_i32_0 = arith.constant 0 : i32
    %c0_i32_1 = arith.constant 0 : i32
    return %c0_i32, %c0_i32_0 : i32, i32
  }
  func.func @transform_4(%arg0: i32) -> (i32, i32) {
    %c0_i32 = arith.constant 0 : i32
    %c0_i32_0 = arith.constant 0 : i32
    %c0_i32_1 = arith.constant 0 : i32
    return %c0_i32, %c0_i32_0 : i32, i32
  }
  func.func @transform_5(%arg0: i32) -> (i32, i32) {
    %c0_i32 = arith.constant 0 : i32
    %c0_i32_0 = arith.constant 0 : i32
    %c0_i32_1 = arith.constant 0 : i32
    return %c0_i32, %c0_i32_0 : i32, i32
  }
  func.func @transform_6(%arg0: i32) -> (i32, i32) {
    %c0_i32 = arith.constant 0 : i32
    %c0_i32_0 = arith.constant 0 : i32
    %c0_i32_1 = arith.constant 0 : i32
    return %c0_i32, %c0_i32_0 : i32, i32
  }
  func.func @transform_7(%arg0: i32) -> (i32, i32) {
    %c0_i32 = arith.constant 0 : i32
    %c0_i32_0 = arith.constant 0 : i32
    %c0_i32_1 = arith.constant 0 : i32
    return %c0_i32, %c0_i32_0 : i32, i32
  }
  func.func @transform_8(%arg0: i32) -> (i32, i32) {
    %c0_i32 = arith.constant 0 : i32
    %c0_i32_0 = arith.constant 0 : i32
    %c0_i32_1 = arith.constant 0 : i32
    return %c0_i32, %c0_i32_0 : i32, i32
  }
  func.func @transform_9(%arg0: i32) -> (i32, i32) {
    %c0_i32 = arith.constant 0 : i32
    %c0_i32_0 = arith.constant 0 : i32
    %c0_i32_1 = arith.constant 0 : i32
    return %c0_i32, %c0_i32_0 : i32, i32
  }
  func.func @transform_10(%arg0: i32) -> (i32, i32, i32) {
    %c0_i32 = arith.constant 0 : i32
    %c0_i32_0 = arith.constant 0 : i32
    %c0_i32_1 = arith.constant 0 : i32
    return %arg0, %c0_i32, %c0_i32_0 : i32, i32, i32
  }
}

</mosaic_0001>

<llo_original>
// kernel: tpu_custom_call.1
$region0: #{tpu_custom_call.1}
  #allocation0 [shape = 'u32[]', space=smem, size = 0x4, offset = 0x4, fixed_abs, tag = 'smem constant byte address 0x4 - core index']
  #allocation1 [shape = 'u32[72,128]{1,0:T(1,128)}', space=vmem, size = 0x9000, scoped, tag = 'internal scratch']
  #allocation2 [shape = 'f32[8,401]{1,0:T(8,128)}', space=vmem, size = 0x4000, scoped, tag = 'scratch operand']
  %s0 = inlined_call_operand.vmem [shape: f32[2,4,256], index: 0, kind: input, shape index: {}]
  %s1 = inlined_call_operand.vmem [shape: f32[3,256], index: 1, kind: input, shape index: {}]
  %s2 = inlined_call_operand.hbm [shape: f32[4,9], index: 2, kind: input, shape index: {}]
  %s3 = inlined_call_operand.vmem [shape: f32[4,1], index: 3, kind: input, shape index: {}]
  %s4 = inlined_call_operand.vmem [shape: f32[8,4], index: 4, kind: input, shape index: {}]
  %s5 = inlined_call_operand.vmem [shape: f32[8,1], index: 5, kind: input, shape index: {}]
  %s6 = inlined_call_operand.vmem [shape: f32[8,9], index: 6, kind: input, shape index: {}]
  %s7 = inlined_call_operand.vmem [shape: f32[8,1], index: 7, kind: input, shape index: {}]
  %s8 = inlined_call_operand.vmem [shape: f32[8,8], index: 8, kind: input, shape index: {}]
  %s9 = inlined_call_operand.vmem [shape: f32[8,1], index: 9, kind: input, shape index: {}]
  %s10 = inlined_call_operand.hbm [shape: f32[2,8,256], index: 10, kind: output, shape index: {}]
  %s11 = sld [smem:[#allocation0]]
  $region77: #{tpu_custom_call.1} parent=0
    _
  %s13 = ssub.s32 1, %s11
  %s14 = scalar_select 0, %s13, %s11
  $region1: #{tpu_custom_call.1} parent=0
    #allocation3 [shape = 'u8[2048]{0}', space=vmem, size = 0x800, scoped, tag = 'input window, operand 2, single buffered']
    #allocation4 [shape = 's32[2]{0}', space=sflag, size = 0x8, scoped, tag = 'scoped memory for tpu_custom_call.1']
    #allocation5 [shape = 's32[2]{0}', space=sflag, size = 0x8, scoped, tag = 'scoped memory for tpu_custom_call.1']
    #allocation6 [shape = 'u8[16384]{0}', space=vmem, size = 0x4000, scoped, tag = 'output window, operand 0']
    %15 = vsyncpa [#allocation4], 0
    %16 = vsyncpa [#allocation5], 0
    %s17 = scalar_lea.sflag [#allocation5], 1
    %18 = vsyncpa %s17, 0
    loop: start=0, step=1, limit=4
    $region2: #{tpu_custom_call.1} parent=1 // loop_pre_header
      _
    $region3: #{tpu_custom_call.1} parent=1 // loop_header
      %s20 = sphi 0, %s24
      %p21 = scmp.ge.s32.totalorder %s20, 4
      %s30 = sphi 0, %s32
      %s33 = sphi 0, %s30
      %s34 = sphi 0, %s33
      %s50 = sphi 0, %s34
      %s54 = sphi 0, %s54
      %s56 = sphi 0, %s54
      %s57 = sphi 0, %s56
      %s71 = sphi 0, %s57
      %s75 = sphi 0, %s75
      %s77 = sphi 0, %s75
      %s78 = sphi 0, %s77
      %s92 = sphi 0, %s78
      %s96 = sphi 0, %s96
      %s98 = sphi 0, %s96
      %s99 = sphi 0, %s98
      %s113 = sphi 0, %s99
      %s117 = sphi 0, %s117
      %s119 = sphi 0, %s117
      %s120 = sphi 0, %s119
      %s134 = sphi 0, %s120
      %s138 = sphi 0, %s138
      %s140 = sphi 0, %s138
      %s141 = sphi 0, %s140
      %s155 = sphi 0, %s141
      %s159 = sphi 0, %s159
      %s161 = sphi 0, %s159
      %s162 = sphi 0, %s161
      %s176 = sphi 0, %s162
      %s180 = sphi 0, %s180
      %s182 = sphi 0, %s180
      %s183 = sphi 0, %s182
      %s197 = sphi 0, %s183
      %s201 = sphi 0, %s201
      %s203 = sphi 0, %s201
      %s204 = sphi 0, %s203
      %s218 = sphi 0, %s204
      %s222 = sphi 0, %s222
      %s224 = sphi 0, %s222
      %s225 = sphi 0, %s224
      %s239 = sphi 0, %s225
      %s245 = sphi 0, %s247
      %s248 = sphi 0, %s245
      %s249 = sphi 0, %s248
      %s265 = sphi 0, %s249
    $region4: #{tpu_custom_call.1} parent=1 // loop_header_branch
      %23 = sbr.rel (%p21) target = $region8
    $region5: #{tpu_custom_call.1} parent=1 // loop_body
      %s25 = ssub.s32 %s20, 1
      %s26 = ssub.s32 %s20, 2
      %s27 = sadd.s32 %s20, 1
      %s28 = ssub.s32 %s20, %s27
      %p29 = scmp.eq.s32.totalorder %s28, 0
      %s31 = sadd.s32 %s30, 1
      %s32 = scalar_select %p29, %s30, %s31
      %p35 = pneg %p29
      %p36 = scmp.eq.s32.totalorder %s20, 1
      %p37 = por %p35, %p36
      %p38 = scmp.ne.s32.totalorder %s30, %s33
      %p39 = scmp.eq.s32.totalorder %s20, 0
      %p40 = por %p38, %p39
      %p41 = scmp.ne.s32.totalorder %s30, %s33
      %p42 = scmp.eq.s32.totalorder %s25, 1
      %p43 = por %p41, %p42
      %p44 = scmp.ne.s32.totalorder %s33, %s34
      %p45 = scmp.eq.s32.totalorder %s25, 0
      %p46 = por %p44, %p45
      %p47 = scmp.ne.s32.totalorder %s33, %s34
      %p48 = scmp.eq.s32.totalorder %s26, 1
      %p49 = por %p47, %p48
      %p51 = scmp.ne.s32.totalorder %s34, %s50
      %p52 = scmp.eq.s32.totalorder %s26, 0
      %p53 = por %p51, %p52
      %s55 = sadd.s32 %s54, 1
      %p58 = scmp.eq.s32.totalorder %s20, 1
      %p59 = scmp.ne.s32.totalorder %s54, %s56
      %p60 = scmp.eq.s32.totalorder %s20, 0
      %p61 = por %p59, %p60
      %p62 = scmp.ne.s32.totalorder %s54, %s56
      %p63 = scmp.eq.s32.totalorder %s25, 1
      %p64 = por %p62, %p63
      %p65 = scmp.ne.s32.totalorder %s56, %s57
      %p66 = scmp.eq.s32.totalorder %s25, 0
      %p67 = por %p65, %p66
      %p68 = scmp.ne.s32.totalorder %s56, %s57
      %p69 = scmp.eq.s32.totalorder %s26, 1
      %p70 = por %p68, %p69
      %p72 = scmp.ne.s32.totalorder %s57, %s71
      %p73 = scmp.eq.s32.totalorder %s26, 0
      %p74 = por %p72, %p73
      %s76 = sadd.s32 %s75, 1
      %p79 = scmp.eq.s32.totalorder %s20, 1
      %p80 = scmp.ne.s32.totalorder %s75, %s77
      %p81 = scmp.eq.s32.totalorder %s20, 0
      %p82 = por %p80, %p81
      %p83 = scmp.ne.s32.totalorder %s75, %s77
      %p84 = scmp.eq.s32.totalorder %s25, 1
      %p85 = por %p83, %p84
      %p86 = scmp.ne.s32.totalorder %s77, %s78
      %p87 = scmp.eq.s32.totalorder %s25, 0
      %p88 = por %p86, %p87
      %p89 = scmp.ne.s32.totalorder %s77, %s78
      %p90 = scmp.eq.s32.totalorder %s26, 1
      %p91 = por %p89, %p90
      %p93 = scmp.ne.s32.totalorder %s78, %s92
      %p94 = scmp.eq.s32.totalorder %s26, 0
      %p95 = por %p93, %p94
      %s97 = sadd.s32 %s96, 1
      %p100 = scmp.eq.s32.totalorder %s20, 1
      %p101 = scmp.ne.s32.totalorder %s96, %s98
      %p102 = scmp.eq.s32.totalorder %s20, 0
      %p103 = por %p101, %p102
      %p104 = scmp.ne.s32.totalorder %s96, %s98
      %p105 = scmp.eq.s32.totalorder %s25, 1
      %p106 = por %p104, %p105
      %p107 = scmp.ne.s32.totalorder %s98, %s99
      %p108 = scmp.eq.s32.totalorder %s25, 0
      %p109 = por %p107, %p108
      %p110 = scmp.ne.s32.totalorder %s98, %s99
      %p111 = scmp.eq.s32.totalorder %s26, 1
      %p112 = por %p110, %p111
      %p114 = scmp.ne.s32.totalorder %s99, %s113
      %p115 = scmp.eq.s32.totalorder %s26, 0
      %p116 = por %p114, %p115
      %s118 = sadd.s32 %s117, 1
      %p121 = scmp.eq.s32.totalorder %s20, 1
      %p122 = scmp.ne.s32.totalorder %s117, %s119
      %p123 = scmp.eq.s32.totalorder %s20, 0
      %p124 = por %p122, %p123
      %p125 = scmp.ne.s32.totalorder %s117, %s119
      %p126 = scmp.eq.s32.totalorder %s25, 1
      %p127 = por %p125, %p126
      %p128 = scmp.ne.s32.totalorder %s119, %s120
      %p129 = scmp.eq.s32.totalorder %s25, 0
      %p130 = por %p128, %p129
      %p131 = scmp.ne.s32.totalorder %s119, %s120
      %p132 = scmp.eq.s32.totalorder %s26, 1
      %p133 = por %p131, %p132
      %p135 = scmp.ne.s32.totalorder %s120, %s134
      %p136 = scmp.eq.s32.totalorder %s26, 0
      %p137 = por %p135, %p136
      %s139 = sadd.s32 %s138, 1
      %p142 = scmp.eq.s32.totalorder %s20, 1
      %p143 = scmp.ne.s32.totalorder %s138, %s140
      %p144 = scmp.eq.s32.totalorder %s20, 0
      %p145 = por %p143, %p144
      %p146 = scmp.ne.s32.totalorder %s138, %s140
      %p147 = scmp.eq.s32.totalorder %s25, 1
      %p148 = por %p146, %p147
      %p149 = scmp.ne.s32.totalorder %s140, %s141
      %p150 = scmp.eq.s32.totalorder %s25, 0
      %p151 = por %p149, %p150
      %p152 = scmp.ne.s32.totalorder %s140, %s141
      %p153 = scmp.eq.s32.totalorder %s26, 1
      %p154 = por %p152, %p153
      %p156 = scmp.ne.s32.totalorder %s141, %s155
      %p157 = scmp.eq.s32.totalorder %s26, 0
      %p158 = por %p156, %p157
      %s160 = sadd.s32 %s159, 1
      %p163 = scmp.eq.s32.totalorder %s20, 1
      %p164 = scmp.ne.s32.totalorder %s159, %s161
      %p165 = scmp.eq.s32.totalorder %s20, 0
      %p166 = por %p164, %p165
      %p167 = scmp.ne.s32.totalorder %s159, %s161
      %p168 = scmp.eq.s32.totalorder %s25, 1
      %p169 = por %p167, %p168
      %p170 = scmp.ne.s32.totalorder %s161, %s162
      %p171 = scmp.eq.s32.totalorder %s25, 0
      %p172 = por %p170, %p171
      %p173 = scmp.ne.s32.totalorder %s161, %s162
      %p174 = scmp.eq.s32.totalorder %s26, 1
      %p175 = por %p173, %p174
      %p177 = scmp.ne.s32.totalorder %s162, %s176
      %p178 = scmp.eq.s32.totalorder %s26, 0
      %p179 = por %p177, %p178
      %s181 = sadd.s32 %s180, 1
      %p184 = scmp.eq.s32.totalorder %s20, 1
      %p185 = scmp.ne.s32.totalorder %s180, %s182
      %p186 = scmp.eq.s32.totalorder %s20, 0
      %p187 = por %p185, %p186
      %p188 = scmp.ne.s32.totalorder %s180, %s182
      %p189 = scmp.eq.s32.totalorder %s25, 1
      %p190 = por %p188, %p189
      %p191 = scmp.ne.s32.totalorder %s182, %s183
      %p192 = scmp.eq.s32.totalorder %s25, 0
      %p193 = por %p191, %p192
      %p194 = scmp.ne.s32.totalorder %s182, %s183
      %p195 = scmp.eq.s32.totalorder %s26, 1
      %p196 = por %p194, %p195
      %p198 = scmp.ne.s32.totalorder %s183, %s197
      %p199 = scmp.eq.s32.totalorder %s26, 0
      %p200 = por %p198, %p199
      %s202 = sadd.s32 %s201, 1
      %p205 = scmp.eq.s32.totalorder %s20, 1
      %p206 = scmp.ne.s32.totalorder %s201, %s203
      %p207 = scmp.eq.s32.totalorder %s20, 0
      %p208 = por %p206, %p207
      %p209 = scmp.ne.s32.totalorder %s201, %s203
      %p210 = scmp.eq.s32.totalorder %s25, 1
      %p211 = por %p209, %p210
      %p212 = scmp.ne.s32.totalorder %s203, %s204
      %p213 = scmp.eq.s32.totalorder %s25, 0
      %p214 = por %p212, %p213
      %p215 = scmp.ne.s32.totalorder %s203, %s204
      %p216 = scmp.eq.s32.totalorder %s26, 1
      %p217 = por %p215, %p216
      %p219 = scmp.ne.s32.totalorder %s204, %s218
      %p220 = scmp.eq.s32.totalorder %s26, 0
      %p221 = por %p219, %p220
      %s223 = sadd.s32 %s222, 1
      %p226 = scmp.eq.s32.totalorder %s20, 1
      %p227 = scmp.ne.s32.totalorder %s222, %s224
      %p228 = scmp.eq.s32.totalorder %s20, 0
      %p229 = por %p227, %p228
      %p230 = scmp.ne.s32.totalorder %s222, %s224
      %p231 = scmp.eq.s32.totalorder %s25, 1
      %p232 = por %p230, %p231
      %p233 = scmp.ne.s32.totalorder %s224, %s225
      %p234 = scmp.eq.s32.totalorder %s25, 0
      %p235 = por %p233, %p234
      %p236 = scmp.ne.s32.totalorder %s224, %s225
      %p237 = scmp.eq.s32.totalorder %s26, 1
      %p238 = por %p236, %p237
      %p240 = scmp.ne.s32.totalorder %s225, %s239
      %p241 = scmp.eq.s32.totalorder %s26, 0
      %p242 = por %p240, %p241
      %s243 = ssub.s32 %s20, %s27
      %p244 = scmp.eq.s32.totalorder %s243, 0
      %s246 = sadd.s32 %s245, 1
      %s247 = scalar_select %p244, %s245, %s246
      %p250 = pneg %p244
      %p251 = scmp.eq.s32.totalorder %s20, 1
      %p252 = por %p250, %p251
      %p253 = scmp.ne.s32.totalorder %s245, %s248
      %p254 = scmp.eq.s32.totalorder %s20, 0
      %p255 = por %p253, %p254
      %p256 = scmp.ne.s32.totalorder %s245, %s248
      %p257 = scmp.eq.s32.totalorder %s25, 1
      %p258 = por %p256, %p257
      %p259 = scmp.ne.s32.totalorder %s248, %s249
      %p260 = scmp.eq.s32.totalorder %s25, 0
      %p261 = por %p259, %p260
      %p262 = scmp.ne.s32.totalorder %s248, %s249
      %p263 = scmp.eq.s32.totalorder %s26, 1
      %p264 = por %p262, %p263
      %p266 = scmp.ne.s32.totalorder %s249, %s265
      %p267 = scmp.eq.s32.totalorder %s26, 0
      %p268 = por %p266, %p267
      %p269 = scmp.le.s32.totalorder 1, %s20
      %p270 = scmp.lt.s32.totalorder %s20, 3
      %p271 = pnand %p269, %p270
      %p272 = pneg %p271
      // Predicated region
      $region9: #{tpu_custom_call.1} parent=5 // pred_check
        _
      $region10: #{tpu_custom_call.1} parent=5 // pred_check_branch
        %274 = sbr.rel (%p271) target = $region12
      $region11: #{tpu_custom_call.1} parent=5 // pred_region
        %s275 = ssub.s32 %s20, 1
        // Predicated region
        $region13: #{tpu_custom_call.1} parent=11 // pred_check
          %p276 = pneg %p67
        $region14: #{tpu_custom_call.1} parent=11 // pred_check_branch
          %278 = sbr.rel (%p276) target = $region16
        $region15: #{tpu_custom_call.1} parent=11 // pred_region
          _
        $region16: #{tpu_custom_call.1} parent=11 // pred_fallthru
          _
        // Predicated region
        $region17: #{tpu_custom_call.1} parent=11 // pred_check
          %p279 = pneg %p88
        $region18: #{tpu_custom_call.1} parent=11 // pred_check_branch
          %281 = sbr.rel (%p279) target = $region20
        $region19: #{tpu_custom_call.1} parent=11 // pred_region
          %283 = vsyncadd [#allocation4], 0
          %s285 = sshll.u32 %s2, 4
          %s286 = int_to_ptr.hbm [resolvable:$true] %s285
          %s287 = sshll.u32 [#allocation3], 4
          %s288 = int_to_ptr.vmem [resolvable:$true] %s287
          %290 = dma.hbm_to_vmem [thread:$0]  %s286, 64, %s288, [#allocation4]
        $region20: #{tpu_custom_call.1} parent=11 // pred_fallthru
          _
        // Predicated region
        $region21: #{tpu_custom_call.1} parent=11 // pred_check
          %p291 = pneg %p109
        $region22: #{tpu_custom_call.1} parent=11 // pred_check_branch
          %293 = sbr.rel (%p291) target = $region24
        $region23: #{tpu_custom_call.1} parent=11 // pred_region
          _
        $region24: #{tpu_custom_call.1} parent=11 // pred_fallthru
          _
        // Predicated region
        $region25: #{tpu_custom_call.1} parent=11 // pred_check
          %p294 = pneg %p130
        $region26: #{tpu_custom_call.1} parent=11 // pred_check_branch
          %296 = sbr.rel (%p294) target = $region28
        $region27: #{tpu_custom_call.1} parent=11 // pred_region
          _
        $region28: #{tpu_custom_call.1} parent=11 // pred_fallthru
          _
        // Predicated region
        $region29: #{tpu_custom_call.1} parent=11 // pred_check
          %p297 = pneg %p151
        $region30: #{tpu_custom_call.1} parent=11 // pred_check_branch
          %299 = sbr.rel (%p297) target = $region32
        $region31: #{tpu_custom_call.1} parent=11 // pred_region
          _
        $region32: #{tpu_custom_call.1} parent=11 // pred_fallthru
          _
        // Predicated region
        $region33: #{tpu_custom_call.1} parent=11 // pred_check
          %p300 = pneg %p172
        $region34: #{tpu_custom_call.1} parent=11 // pred_check_branch
          %302 = sbr.rel (%p300) target = $region36
        $region35: #{tpu_custom_call.1} parent=11 // pred_region
          _
        $region36: #{tpu_custom_call.1} parent=11 // pred_fallthru
          _
        // Predicated region
        $region37: #{tpu_custom_call.1} parent=11 // pred_check
          %p303 = pneg %p193
        $region38: #{tpu_custom_call.1} parent=11 // pred_check_branch
          %305 = sbr.rel (%p303) target = $region40
        $region39: #{tpu_custom_call.1} parent=11 // pred_region
          _
        $region40: #{tpu_custom_call.1} parent=11 // pred_fallthru
          _
        // Predicated region
        $region41: #{tpu_custom_call.1} parent=11 // pred_check
          %p306 = pneg %p214
        $region42: #{tpu_custom_call.1} parent=11 // pred_check_branch
          %308 = sbr.rel (%p306) target = $region44
        $region43: #{tpu_custom_call.1} parent=11 // pred_region
          _
        $region44: #{tpu_custom_call.1} parent=11 // pred_fallthru
          _
        // Predicated region
        $region45: #{tpu_custom_call.1} parent=11 // pred_check
          %p309 = pneg %p235
        $region46: #{tpu_custom_call.1} parent=11 // pred_check_branch
          %311 = sbr.rel (%p309) target = $region48
        $region47: #{tpu_custom_call.1} parent=11 // pred_region
          _
        $region48: #{tpu_custom_call.1} parent=11 // pred_fallthru
          _
      $region12: #{tpu_custom_call.1} parent=5 // pred_fallthru
        _
      %p312 = scmp.lt.s32.totalorder %s20, 2
      // Predicated region
      $region49: #{tpu_custom_call.1} parent=5 // pred_check
        %p313 = pneg %p312
      $region50: #{tpu_custom_call.1} parent=5 // pred_check_branch
        %315 = sbr.rel (%p313) target = $region52
      $region51: #{tpu_custom_call.1} parent=5 // pred_region
        // Predicated region
        $region53: #{tpu_custom_call.1} parent=51 // pred_check
          %p316 = pneg %p40
        $region54: #{tpu_custom_call.1} parent=51 // pred_check_branch
          %318 = sbr.rel (%p316) target = $region56
        $region55: #{tpu_custom_call.1} parent=51 // pred_region
          %p319 = scmp.lt.s32.totalorder %s20, 1
          %s320 = scalar_select %p319, %s20, 1
          %s321 = smul.addr %s320, 2
          %s322 = smul.addr %s321, 4
          %s323 = scalar_lea.vmem %s0, %s322
        $region56: #{tpu_custom_call.1} parent=51 // pred_fallthru
          _
      $region52: #{tpu_custom_call.1} parent=5 // pred_fallthru
        _
      %p324 = scmp.le.s32.totalorder 1, %s20
      %p325 = scmp.lt.s32.totalorder %s20, 3
      %p326 = pnand %p324, %p325
      %p327 = pneg %p326
      // Predicated region
      $region57: #{tpu_custom_call.1} parent=5 // pred_check
        _
      $region58: #{tpu_custom_call.1} parent=5 // pred_check_branch
        %329 = sbr.rel (%p326) target = $region60
      $region59: #{tpu_custom_call.1} parent=5 // pred_region
        %s330 = ssub.s32 %s20, 1
        // Predicated region
        $region61: #{tpu_custom_call.1} parent=59 // pred_check
          %p331 = pneg %p88
        $region62: #{tpu_custom_call.1} parent=59 // pred_check_branch
          %333 = sbr.rel (%p331) target = $region64
        $region63: #{tpu_custom_call.1} parent=59 // pred_region
          %335 = dma.done [#allocation4], 64
        $region64: #{tpu_custom_call.1} parent=59 // pred_fallthru
          _
        %p336 = scmp.lt.s32.totalorder %s25, 1
        %s337 = scalar_select %p336, %s25, 1
        %s338 = smul.addr %s337, 2
        %s339 = smul.addr %s338, 4
        %s340 = scalar_lea.vmem %s0, %s339
        %p341 = pneg %p46
        %p342 = pneg %p43
        %p343 = pneg %p67
        %p344 = pneg %p64
        %p345 = pneg %p88
        %p346 = pneg %p85
        %p347 = pneg %p109
        %p348 = pneg %p106
        %p349 = pneg %p130
        %p350 = pneg %p127
        %p351 = pneg %p151
        %p352 = pneg %p148
        %p353 = pneg %p172
        %p354 = pneg %p169
        %p355 = pneg %p193
        %p356 = pneg %p190
        %p357 = pneg %p214
        %p358 = pneg %p211
        %p359 = pneg %p235
        %p360 = pneg %p232
        %p361 = pneg %p261
        %p362 = pneg %p258
        %s363 = sand.u32 %s248, 1
        %s364 = scalar_lea.sflag [#allocation5], %s363
        %s365 = sand.u32 %s248, 1
        %s366 = smul.addr %s365, 16
        %s367 = scalar_lea.vmem [#allocation6], %s366
        %p368 = scmp.lt.s32.totalorder %s25, 1
        %s369 = scalar_select %p368, %s25, 1
        %s370 = smul.addr %s369, 2
        %s371 = smul.addr %s370, 4
        %s372 = scalar_lea.vmem %s0, %s371
        %373 = vst [vmem:[#allocation2] sm:$0xff] 0.0
        %374 = vst [vmem:[#allocation2 + $0x8] sm:$0xff] 0.0
        %375 = vst [vmem:[#allocation2 + $0x10] sm:$0xff] 0.0
        %vm376 = vcmask 138240
        %377 = vst.msk [vmem:[#allocation2 + $0x18] sm:$0xff] %vm376, 0.0
        %v378 = vld [vmem:[%s1] sm:$0x77]
        %v379 = vld [vmem:[%s372] sm:$0xff]
        %v380 = vld [vmem:[#allocation3] sm:$0xf]
        %v381 = vld [vmem:[%s3] sm:$0xf]
        %383 = vst [vmem:[#allocation1] ss:$2 sm:$0xff] %v379
        %v384 = vld.sshfl [vmem:[#allocation1] sm:$0xff pattern:$0x75316420]
        %v385 = vld.sshfl [vmem:[#allocation1 + $0x8] sm:$0xff pattern:$0x75316420]
        %388 = vst [vmem:[#allocation2 + $0x8] sm:$0xf] %v384
        %389 = vst [vmem:[#allocation2 + $0x10] sm:$0xf] %v385
        %v390 = vld [vmem:[#allocation2] sm:$0xf]
        %v391 = vld [vmem:[#allocation2 + $0x8] sm:$0xf]
        %v392 = vld [vmem:[#allocation2 + $0x10] sm:$0xf]
        %v394 = vperm.slane %v378, 0
        %v395 = vperm.slane %v378, 4
        %v398 = vperm.slane %v394, 0
        %v399 = vperm.slane %v395, 0
        %402 = vrot.lane.b32.xlu0 %v398, 111
        %v403 = vpop.permute.xlu0 %402
        %404 = vrot.lane.b32.xlu0 %v399, 111
        %v405 = vpop.permute.xlu0 %404
        %vm406 = vcmask 908288
        %v407 = vsel %vm406, %v403, %v405
        %v411 = vmul.f32 %v390, %v403
        %v412 = vmul.f32 %v391, %v407
        %v413 = vmul.f32 %v392, %v405
        %415 = vset.pattern.permute.xlu0 0
        %416 = vperm.xlu0 %415, %v380
        %v417 = vpop.permute.xlu0 %416
        %v419 = vmul.f32 %v411, %v417
        %v420 = vmul.f32 %v412, %v417
        %v421 = vmul.f32 %v413, %v417
        %v422 = vadd.f32 %v419, 0.0
        %v423 = vadd.f32 %v420, 0.0
        %v424 = vadd.f32 %v421, 0.0
        %425 = vset.pattern.permute.xlu0 1
        %426 = vperm.xlu0 %425, %v380
        %v427 = vpop.permute.xlu0 %426
        %v429 = vmul.f32 %v390, %v427
        %v430 = vmul.f32 %v391, %v427
        %v431 = vmul.f32 %v392, %v427
        %435 = vrot.lane.b32.xlu0 %v429, 127
        %v436 = vpop.permute.xlu0 %435
        %437 = vrot.lane.b32.xlu0 %v430, 127
        %v438 = vpop.permute.xlu0 %437
        %439 = vrot.lane.b32.xlu0 %v431, 127
        %v440 = vpop.permute.xlu0 %439
        %vm441 = vcmask 1039360
        %v442 = vsel %vm441, %v436, %v438
        %v443 = vsel %vm441, %v438, %v440
        %v447 = vadd.f32 %v422, %v442
        %v448 = vadd.f32 %v423, %v443
        %v449 = vadd.f32 %v424, %v440
        %v450 = vperm.slane %v378, 2
        %v451 = vperm.slane %v378, 6
        %v454 = vperm.slane %v450, 2
        %v455 = vperm.slane %v451, 2
        %458 = vrot.lane.b32.xlu0 %v454, 113
        %v459 = vpop.permute.xlu0 %458
        %460 = vrot.lane.b32.xlu0 %v455, 113
        %v461 = vpop.permute.xlu0 %460
        %vm462 = vcmask 924672
        %v463 = vsel %vm462, %v459, %v461
        %v467 = vmul.f32 %v390, %v459
        %v468 = vmul.f32 %v391, %v463
        %v469 = vmul.f32 %v392, %v461
        %470 = vset.pattern.permute.xlu0 2
        %471 = vperm.xlu0 %470, %v380
        %v472 = vpop.permute.xlu0 %471
        %v474 = vmul.f32 %v467, %v472
        %v475 = vmul.f32 %v468, %v472
        %v476 = vmul.f32 %v469, %v472
        %480 = vrot.lane.b32.xlu0 %v474, 126
        %v481 = vpop.permute.xlu0 %480
        %482 = vrot.lane.b32.xlu0 %v475, 126
        %v483 = vpop.permute.xlu0 %482
        %484 = vrot.lane.b32.xlu0 %v476, 126
        %v485 = vpop.permute.xlu0 %484
        %vm486 = vcmask 1031168
        %v487 = vsel %vm486, %v481, %v483
        %v488 = vsel %vm486, %v483, %v485
        %v492 = vadd.f32 %v447, %v487
        %v493 = vadd.f32 %v448, %v488
        %v494 = vadd.f32 %v449, %v485
        %495 = vrot.lane.b32.xlu0 %v398, 127
        %v496 = vpop.permute.xlu0 %495
        %497 = vrot.lane.b32.xlu0 %v399, 127
        %v498 = vpop.permute.xlu0 %497
        %v499 = vsel %vm441, %v496, %v498
        %v503 = vmul.f32 %v390, %v496
        %v504 = vmul.f32 %v391, %v499
        %v505 = vmul.f32 %v392, %v498
        %506 = vset.pattern.permute.xlu0 3
        %507 = vperm.xlu0 %506, %v380
        %v508 = vpop.permute.xlu0 %507
        %v510 = vmul.f32 %v503, %v508
        %v511 = vmul.f32 %v504, %v508
        %v512 = vmul.f32 %v505, %v508
        %516 = vrot.lane.b32.xlu0 %v510, 112
        %v517 = vpop.permute.xlu0 %516
        %518 = vrot.lane.b32.xlu0 %v511, 112
        %v519 = vpop.permute.xlu0 %518
        %520 = vrot.lane.b32.xlu0 %v512, 112
        %v521 = vpop.permute.xlu0 %520
        %vm522 = vcmask 916480
        %v523 = vsel %vm522, %v517, %v519
        %v524 = vsel %vm522, %v519, %v521
        %v528 = vadd.f32 %v492, %v523
        %v529 = vadd.f32 %v493, %v524
        %v530 = vadd.f32 %v494, %v521
        %531 = vset.pattern.permute.xlu0 4
        %532 = vperm.xlu0 %531, %v380
        %v533 = vpop.permute.xlu0 %532
        %v535 = vmul.f32 %v391, %v533
        %v536 = vmul.f32 %v392, %v533
        %539 = vrot.lane.b32.xlu0 %v535, 111
        %v540 = vpop.permute.xlu0 %539
        %541 = vrot.lane.b32.xlu0 %v536, 111
        %v542 = vpop.permute.xlu0 %541
        %v543 = vsel %vm406, %v540, %v542
        %v547 = vadd.f32 %v528, %v540
        %v548 = vadd.f32 %v529, %v543
        %v549 = vadd.f32 %v530, %v542
        %v550 = vld [vmem:[#allocation2 + $0x8] sm:$0xf]
        %v551 = vld [vmem:[#allocation2 + $0x10] sm:$0xf]
        %v552 = vld [vmem:[#allocation2 + $0x18] sm:$0xf]
        %553 = vrot.lane.b32.xlu0 %v454, 1
        %v554 = vpop.permute.xlu0 %553
        %555 = vrot.lane.b32.xlu0 %v455, 1
        %v556 = vpop.permute.xlu0 %555
        %vm557 = vcmask 7168
        %v558 = vsel %vm557, %v554, %v556
        %v562 = vmul.f32 %v550, %v554
        %v563 = vmul.f32 %v551, %v558
        %v564 = vmul.f32 %v552, %v556
        %565 = vset.pattern.permute.xlu0 5
        %566 = vperm.xlu0 %565, %v380
        %v567 = vpop.permute.xlu0 %566
        %v569 = vmul.f32 %v562, %v567
        %v570 = vmul.f32 %v563, %v567
        %v571 = vmul.f32 %v564, %v567
        %575 = vrot.lane.b32.xlu0 %v569, 110
        %v576 = vpop.permute.xlu0 %575
        %577 = vrot.lane.b32.xlu0 %v570, 110
        %v578 = vpop.permute.xlu0 %577
        %579 = vrot.lane.b32.xlu0 %v571, 110
        %v580 = vpop.permute.xlu0 %579
        %vm581 = vcmask 900096
        %v582 = vsel %vm581, %v576, %v578
        %v583 = vsel %vm581, %v578, %v580
        %v587 = vadd.f32 %v547, %v576
        %v588 = vadd.f32 %v548, %v582
        %v589 = vadd.f32 %v549, %v583
        %590 = vrot.lane.b32.xlu0 %v398, 15
        %v591 = vpop.permute.xlu0 %590
        %592 = vrot.lane.b32.xlu0 %v399, 15
        %v593 = vpop.permute.xlu0 %592
        %vm594 = vcmask 121856
        %v595 = vsel %vm594, %v591, %v593
        %v599 = vmul.f32 %v550, %v591
        %v600 = vmul.f32 %v551, %v595
        %v601 = vmul.f32 %v552, %v593
        %602 = vset.pattern.permute.xlu0 6
        %603 = vperm.xlu0 %602, %v380
        %v604 = vpop.permute.xlu0 %603
        %v606 = vmul.f32 %v599, %v604
        %v607 = vmul.f32 %v600, %v604
        %v608 = vmul.f32 %v601, %v604
        %612 = vrot.lane.b32.xlu0 %v606, 96
        %v613 = vpop.permute.xlu0 %612
        %614 = vrot.lane.b32.xlu0 %v607, 96
        %v615 = vpop.permute.xlu0 %614
        %616 = vrot.lane.b32.xlu0 %v608, 96
        %v617 = vpop.permute.xlu0 %616
        %vm618 = vcmask 785408
        %v619 = vsel %vm618, %v613, %v615
        %v620 = vsel %vm618, %v615, %v617
        %v624 = vadd.f32 %v587, %v613
        %v625 = vadd.f32 %v588, %v619
        %v626 = vadd.f32 %v589, %v620
        %627 = vset.pattern.permute.xlu0 7
        %628 = vperm.xlu0 %627, %v380
        %v629 = vpop.permute.xlu0 %628
        %v631 = vmul.f32 %v550, %v629
        %v632 = vmul.f32 %v551, %v629
        %v633 = vmul.f32 %v552, %v629
        %637 = vrot.lane.b32.xlu0 %v631, 95
        %v638 = vpop.permute.xlu0 %637
        %639 = vrot.lane.b32.xlu0 %v632, 95
        %v640 = vpop.permute.xlu0 %639
        %641 = vrot.lane.b32.xlu0 %v633, 95
        %v642 = vpop.permute.xlu0 %641
        %vm643 = vcmask 777216
        %v644 = vsel %vm643, %v638, %v640
        %v645 = vsel %vm643, %v640, %v642
        %v649 = vadd.f32 %v624, %v638
        %v650 = vadd.f32 %v625, %v644
        %v651 = vadd.f32 %v626, %v645
        %652 = vrot.lane.b32.xlu0 %v454, 17
        %v653 = vpop.permute.xlu0 %652
        %654 = vrot.lane.b32.xlu0 %v455, 17
        %v655 = vpop.permute.xlu0 %654
        %v656 = vsel %vm376, %v653, %v655
        %v660 = vmul.f32 %v550, %v653
        %v661 = vmul.f32 %v551, %v656
        %v662 = vmul.f32 %v552, %v655
        %663 = vset.pattern.permute.xlu0 8
        %664 = vperm.xlu0 %663, %v380
        %v665 = vpop.permute.xlu0 %664
        %v667 = vmul.f32 %v660, %v665
        %v668 = vmul.f32 %v661, %v665
        %v669 = vmul.f32 %v662, %v665
        %673 = vrot.lane.b32.xlu0 %v667, 94
        %v674 = vpop.permute.xlu0 %673
        %675 = vrot.lane.b32.xlu0 %v668, 94
        %v676 = vpop.permute.xlu0 %675
        %677 = vrot.lane.b32.xlu0 %v669, 94
        %v678 = vpop.permute.xlu0 %677
        %vm679 = vcmask 769024
        %v680 = vsel %vm679, %v674, %v676
        %v681 = vsel %vm679, %v676, %v678
        %v685 = vadd.f32 %v649, %v674
        %v686 = vadd.f32 %v650, %v680
        %v687 = vadd.f32 %v651, %v681
        %689 = vset.pattern.permute.xlu0 0
        %690 = vperm.xlu0 %689, %v381
        %v691 = vpop.permute.xlu0 %690
        %v693 = vadd.f32 %v685, %v691
        %v694 = vadd.f32 %v686, %v691
        %v695 = vadd.f32 %v687, %v691
        %v696 = vld [vmem:[%s4] sm:$0xff]
        %v697 = vld [vmem:[%s5] sm:$0xff]
        %699 = vset.pattern.permute.xlu0 0
        %700 = vperm.xlu0 %699, %v696
        %v701 = vpop.permute.xlu0 %700
        %v703 = vperm.slane %v693, 0
        %v704 = vperm.slane %v694, 0
        %v705 = vperm.slane %v695, 0
        %v706 = vmul.f32 %v701, %v703
        %v707 = vmul.f32 %v701, %v704
        %v708 = vmul.f32 %v701, %v705
        %v709 = vadd.f32 %v706, 0.0
        %v710 = vadd.f32 %v707, 0.0
        %v711 = vadd.f32 %v708, 0.0
        %712 = vset.pattern.permute.xlu0 1
        %713 = vperm.xlu0 %712, %v696
        %v714 = vpop.permute.xlu0 %713
        %v716 = vperm.slane %v693, 1
        %v717 = vperm.slane %v694, 1
        %v718 = vperm.slane %v695, 1
        %v719 = vmul.f32 %v714, %v716
        %v720 = vmul.f32 %v714, %v717
        %v721 = vmul.f32 %v714, %v718
        %v722 = vadd.f32 %v709, %v719
        %v723 = vadd.f32 %v710, %v720
        %v724 = vadd.f32 %v711, %v721
        %725 = vset.pattern.permute.xlu0 2
        %726 = vperm.xlu0 %725, %v696
        %v727 = vpop.permute.xlu0 %726
        %v729 = vperm.slane %v693, 2
        %v730 = vperm.slane %v694, 2
        %v731 = vperm.slane %v695, 2
        %v732 = vmul.f32 %v727, %v729
        %v733 = vmul.f32 %v727, %v730
        %v734 = vmul.f32 %v727, %v731
        %v735 = vadd.f32 %v722, %v732
        %v736 = vadd.f32 %v723, %v733
        %v737 = vadd.f32 %v724, %v734
        %738 = vset.pattern.permute.xlu0 3
        %739 = vperm.xlu0 %738, %v696
        %v740 = vpop.permute.xlu0 %739
        %v742 = vperm.slane %v693, 3
        %v743 = vperm.slane %v694, 3
        %v744 = vperm.slane %v695, 3
        %v745 = vmul.f32 %v740, %v742
        %v746 = vmul.f32 %v740, %v743
        %v747 = vmul.f32 %v740, %v744
        %v748 = vadd.f32 %v735, %v745
        %v749 = vadd.f32 %v736, %v746
        %v750 = vadd.f32 %v737, %v747
        %752 = vset.pattern.permute.xlu0 0
        %753 = vperm.xlu0 %752, %v697
        %v754 = vpop.permute.xlu0 %753
        %v756 = vadd.f32 %v748, %v754
        %v757 = vadd.f32 %v749, %v754
        %v758 = vadd.f32 %v750, %v754
        %v759 = vmax.f32 %v756, 0.0
        %v760 = vmax.f32 %v757, 0.0
        %v761 = vmax.f32 %v758, 0.0
        %v762 = vld [vmem:[%s6] sm:$0xff]
        %v763 = vld [vmem:[%s7] sm:$0xff]
        %767 = vrot.lane.b32.xlu0 %v759, 17
        %v768 = vpop.permute.xlu0 %767
        %769 = vrot.lane.b32.xlu0 %v760, 17
        %v770 = vpop.permute.xlu0 %769
        %771 = vrot.lane.b32.xlu0 %v761, 17
        %v772 = vpop.permute.xlu0 %771
        %v773 = vsel %vm376, %v768, %v770
        %v774 = vsel %vm376, %v770, %v772
        %777 = vst [vmem:[#allocation2 + $0x8] sm:$0xff] %v773
        %778 = vst [vmem:[#allocation2 + $0x10] sm:$0xff] %v774
        %v779 = vld [vmem:[#allocation2] sm:$0xff]
        %v780 = vld [vmem:[#allocation2 + $0x8] sm:$0xff]
        %v781 = vld [vmem:[#allocation2 + $0x10] sm:$0xff]
        %v782 = vmul.f32 %v779, %v403
        %v783 = vmul.f32 %v780, %v407
        %v784 = vmul.f32 %v781, %v405
        %786 = vset.pattern.permute.xlu0 0
        %787 = vperm.xlu0 %786, %v762
        %v788 = vpop.permute.xlu0 %787
        %v790 = vmul.f32 %v782, %v788
        %v791 = vmul.f32 %v783, %v788
        %v792 = vmul.f32 %v784, %v788
        %v793 = vadd.f32 %v790, 0.0
        %v794 = vadd.f32 %v791, 0.0
        %v795 = vadd.f32 %v792, 0.0
        %796 = vset.pattern.permute.xlu0 1
        %797 = vperm.xlu0 %796, %v762
        %v798 = vpop.permute.xlu0 %797
        %v800 = vmul.f32 %v779, %v798
        %v801 = vmul.f32 %v780, %v798
        %v802 = vmul.f32 %v781, %v798
        %806 = vrot.lane.b32.xlu0 %v800, 127
        %v807 = vpop.permute.xlu0 %806
        %808 = vrot.lane.b32.xlu0 %v801, 127
        %v809 = vpop.permute.xlu0 %808
        %810 = vrot.lane.b32.xlu0 %v802, 127
        %v811 = vpop.permute.xlu0 %810
        %v812 = vsel %vm441, %v807, %v809
        %v813 = vsel %vm441, %v809, %v811
        %v817 = vadd.f32 %v793, %v812
        %v818 = vadd.f32 %v794, %v813
        %v819 = vadd.f32 %v795, %v811
        %v820 = vmul.f32 %v779, %v459
        %v821 = vmul.f32 %v780, %v463
        %v822 = vmul.f32 %v781, %v461
        %823 = vset.pattern.permute.xlu0 2
        %824 = vperm.xlu0 %823, %v762
        %v825 = vpop.permute.xlu0 %824
        %v827 = vmul.f32 %v820, %v825
        %v828 = vmul.f32 %v821, %v825
        %v829 = vmul.f32 %v822, %v825
        %833 = vrot.lane.b32.xlu0 %v827, 126
        %v834 = vpop.permute.xlu0 %833
        %835 = vrot.lane.b32.xlu0 %v828, 126
        %v836 = vpop.permute.xlu0 %835
        %837 = vrot.lane.b32.xlu0 %v829, 126
        %v838 = vpop.permute.xlu0 %837
        %v839 = vsel %vm486, %v834, %v836
        %v840 = vsel %vm486, %v836, %v838
        %v844 = vadd.f32 %v817, %v839
        %v845 = vadd.f32 %v818, %v840
        %v846 = vadd.f32 %v819, %v838
        %v847 = vmul.f32 %v779, %v496
        %v848 = vmul.f32 %v780, %v499
        %v849 = vmul.f32 %v781, %v498
        %850 = vset.pattern.permute.xlu0 3
        %851 = vperm.xlu0 %850, %v762
        %v852 = vpop.permute.xlu0 %851
        %v854 = vmul.f32 %v847, %v852
        %v855 = vmul.f32 %v848, %v852
        %v856 = vmul.f32 %v849, %v852
        %860 = vrot.lane.b32.xlu0 %v854, 112
        %v861 = vpop.permute.xlu0 %860
        %862 = vrot.lane.b32.xlu0 %v855, 112
        %v863 = vpop.permute.xlu0 %862
        %864 = vrot.lane.b32.xlu0 %v856, 112
        %v865 = vpop.permute.xlu0 %864
        %v866 = vsel %vm522, %v861, %v863
        %v867 = vsel %vm522, %v863, %v865
        %v871 = vadd.f32 %v844, %v866
        %v872 = vadd.f32 %v845, %v867
        %v873 = vadd.f32 %v846, %v865
        %874 = vset.pattern.permute.xlu0 4
        %875 = vperm.xlu0 %874, %v762
        %v876 = vpop.permute.xlu0 %875
        %v878 = vmul.f32 %v780, %v876
        %v879 = vmul.f32 %v781, %v876
        %882 = vrot.lane.b32.xlu0 %v878, 111
        %v883 = vpop.permute.xlu0 %882
        %884 = vrot.lane.b32.xlu0 %v879, 111
        %v885 = vpop.permute.xlu0 %884
        %v886 = vsel %vm406, %v883, %v885
        %v890 = vadd.f32 %v871, %v883
        %v891 = vadd.f32 %v872, %v886
        %v892 = vadd.f32 %v873, %v885
        %v893 = vld [vmem:[#allocation2 + $0x8] sm:$0xff]
        %v894 = vld [vmem:[#allocation2 + $0x10] sm:$0xff]
        %v895 = vld [vmem:[#allocation2 + $0x18] sm:$0xff]
        %v896 = vmul.f32 %v893, %v554
        %v897 = vmul.f32 %v894, %v558
        %v898 = vmul.f32 %v895, %v556
        %899 = vset.pattern.permute.xlu0 5
        %900 = vperm.xlu0 %899, %v762
        %v901 = vpop.permute.xlu0 %900
        %v903 = vmul.f32 %v896, %v901
        %v904 = vmul.f32 %v897, %v901
        %v905 = vmul.f32 %v898, %v901
        %909 = vrot.lane.b32.xlu0 %v903, 110
        %v910 = vpop.permute.xlu0 %909
        %911 = vrot.lane.b32.xlu0 %v904, 110
        %v912 = vpop.permute.xlu0 %911
        %913 = vrot.lane.b32.xlu0 %v905, 110
        %v914 = vpop.permute.xlu0 %913
        %v915 = vsel %vm581, %v910, %v912
        %v916 = vsel %vm581, %v912, %v914
        %v920 = vadd.f32 %v890, %v910
        %v921 = vadd.f32 %v891, %v915
        %v922 = vadd.f32 %v892, %v916
        %v923 = vmul.f32 %v893, %v591
        %v924 = vmul.f32 %v894, %v595
        %v925 = vmul.f32 %v895, %v593
        %926 = vset.pattern.permute.xlu0 6
        %927 = vperm.xlu0 %926, %v762
        %v928 = vpop.permute.xlu0 %927
        %v930 = vmul.f32 %v923, %v928
        %v931 = vmul.f32 %v924, %v928
        %v932 = vmul.f32 %v925, %v928
        %936 = vrot.lane.b32.xlu0 %v930, 96
        %v937 = vpop.permute.xlu0 %936
        %938 = vrot.lane.b32.xlu0 %v931, 96
        %v939 = vpop.permute.xlu0 %938
        %940 = vrot.lane.b32.xlu0 %v932, 96
        %v941 = vpop.permute.xlu0 %940
        %v942 = vsel %vm618, %v937, %v939
        %v943 = vsel %vm618, %v939, %v941
        %v947 = vadd.f32 %v920, %v937
        %v948 = vadd.f32 %v921, %v942
        %v949 = vadd.f32 %v922, %v943
        %950 = vset.pattern.permute.xlu0 7
        %951 = vperm.xlu0 %950, %v762
        %v952 = vpop.permute.xlu0 %951
        %v954 = vmul.f32 %v893, %v952
        %v955 = vmul.f32 %v894, %v952
        %v956 = vmul.f32 %v895, %v952
        %960 = vrot.lane.b32.xlu0 %v954, 95
        %v961 = vpop.permute.xlu0 %960
        %962 = vrot.lane.b32.xlu0 %v955, 95
        %v963 = vpop.permute.xlu0 %962
        %964 = vrot.lane.b32.xlu0 %v956, 95
        %v965 = vpop.permute.xlu0 %964
        %v966 = vsel %vm643, %v961, %v963
        %v967 = vsel %vm643, %v963, %v965
        %v971 = vadd.f32 %v947, %v961
        %v972 = vadd.f32 %v948, %v966
        %v973 = vadd.f32 %v949, %v967
        %v974 = vmul.f32 %v893, %v653
        %v975 = vmul.f32 %v894, %v656
        %v976 = vmul.f32 %v895, %v655
        %977 = vset.pattern.permute.xlu0 8
        %978 = vperm.xlu0 %977, %v762
        %v979 = vpop.permute.xlu0 %978
        %v981 = vmul.f32 %v974, %v979
        %v982 = vmul.f32 %v975, %v979
        %v983 = vmul.f32 %v976, %v979
        %987 = vrot.lane.b32.xlu0 %v981, 94
        %v988 = vpop.permute.xlu0 %987
        %989 = vrot.lane.b32.xlu0 %v982, 94
        %v990 = vpop.permute.xlu0 %989
        %991 = vrot.lane.b32.xlu0 %v983, 94
        %v992 = vpop.permute.xlu0 %991
        %v993 = vsel %vm679, %v988, %v990
        %v994 = vsel %vm679, %v990, %v992
        %v998 = vadd.f32 %v971, %v988
        %v999 = vadd.f32 %v972, %v993
        %v1000 = vadd.f32 %v973, %v994
        %1002 = vset.pattern.permute.xlu0 0
        %1003 = vperm.xlu0 %1002, %v763
        %v1004 = vpop.permute.xlu0 %1003
        %v1006 = vadd.f32 %v998, %v1004
        %v1007 = vadd.f32 %v999, %v1004
        %v1008 = vadd.f32 %v1000, %v1004
        %v1009 = vld [vmem:[%s8] sm:$0xff]
        %v1010 = vld [vmem:[%s9] sm:$0xff]
        %1012 = vset.pattern.permute.xlu0 0
        %1013 = vperm.xlu0 %1012, %v1009
        %v1014 = vpop.permute.xlu0 %1013
        %v1016 = vperm.slane %v1006, 0
        %v1017 = vperm.slane %v1007, 0
        %v1018 = vperm.slane %v1008, 0
        %v1019 = vmul.f32 %v1014, %v1016
        %v1020 = vmul.f32 %v1014, %v1017
        %v1021 = vmul.f32 %v1014, %v1018
        %v1022 = vadd.f32 %v1019, 0.0
        %v1023 = vadd.f32 %v1020, 0.0
        %v1024 = vadd.f32 %v1021, 0.0
        %1025 = vset.pattern.permute.xlu0 1
        %1026 = vperm.xlu0 %1025, %v1009
        %v1027 = vpop.permute.xlu0 %1026
        %v1029 = vperm.slane %v1006, 1
        %v1030 = vperm.slane %v1007, 1
        %v1031 = vperm.slane %v1008, 1
        %v1032 = vmul.f32 %v1027, %v1029
        %v1033 = vmul.f32 %v1027, %v1030
        %v1034 = vmul.f32 %v1027, %v1031
        %v1035 = vadd.f32 %v1022, %v1032
        %v1036 = vadd.f32 %v1023, %v1033
        %v1037 = vadd.f32 %v1024, %v1034
        %1038 = vset.pattern.permute.xlu0 2
        %1039 = vperm.xlu0 %1038, %v1009
        %v1040 = vpop.permute.xlu0 %1039
        %v1042 = vperm.slane %v1006, 2
        %v1043 = vperm.slane %v1007, 2
        %v1044 = vperm.slane %v1008, 2
        %v1045 = vmul.f32 %v1040, %v1042
        %v1046 = vmul.f32 %v1040, %v1043
        %v1047 = vmul.f32 %v1040, %v1044
        %v1048 = vadd.f32 %v1035, %v1045
        %v1049 = vadd.f32 %v1036, %v1046
        %v1050 = vadd.f32 %v1037, %v1047
        %1051 = vset.pattern.permute.xlu0 3
        %1052 = vperm.xlu0 %1051, %v1009
        %v1053 = vpop.permute.xlu0 %1052
        %v1055 = vperm.slane %v1006, 3
        %v1056 = vperm.slane %v1007, 3
        %v1057 = vperm.slane %v1008, 3
        %v1058 = vmul.f32 %v1053, %v1055
        %v1059 = vmul.f32 %v1053, %v1056
        %v1060 = vmul.f32 %v1053, %v1057
        %v1061 = vadd.f32 %v1048, %v1058
        %v1062 = vadd.f32 %v1049, %v1059
        %v1063 = vadd.f32 %v1050, %v1060
        %1064 = vset.pattern.permute.xlu0 4
        %1065 = vperm.xlu0 %1064, %v1009
        %v1066 = vpop.permute.xlu0 %1065
        %v1068 = vperm.slane %v1006, 4
        %v1069 = vperm.slane %v1007, 4
        %v1070 = vperm.slane %v1008, 4
        %v1071 = vmul.f32 %v1066, %v1068
        %v1072 = vmul.f32 %v1066, %v1069
        %v1073 = vmul.f32 %v1066, %v1070
        %v1074 = vadd.f32 %v1061, %v1071
        %v1075 = vadd.f32 %v1062, %v1072
        %v1076 = vadd.f32 %v1063, %v1073
        %1077 = vset.pattern.permute.xlu0 5
        %1078 = vperm.xlu0 %1077, %v1009
        %v1079 = vpop.permute.xlu0 %1078
        %v1081 = vperm.slane %v1006, 5
        %v1082 = vperm.slane %v1007, 5
        %v1083 = vperm.slane %v1008, 5
        %v1084 = vmul.f32 %v1079, %v1081
        %v1085 = vmul.f32 %v1079, %v1082
        %v1086 = vmul.f32 %v1079, %v1083
        %v1087 = vadd.f32 %v1074, %v1084
        %v1088 = vadd.f32 %v1075, %v1085
        %v1089 = vadd.f32 %v1076, %v1086
        %1090 = vset.pattern.permute.xlu0 6
        %1091 = vperm.xlu0 %1090, %v1009
        %v1092 = vpop.permute.xlu0 %1091
        %v1094 = vperm.slane %v1006, 6
        %v1095 = vperm.slane %v1007, 6
        %v1096 = vperm.slane %v1008, 6
        %v1097 = vmul.f32 %v1092, %v1094
        %v1098 = vmul.f32 %v1092, %v1095
        %v1099 = vmul.f32 %v1092, %v1096
        %v1100 = vadd.f32 %v1087, %v1097
        %v1101 = vadd.f32 %v1088, %v1098
        %v1102 = vadd.f32 %v1089, %v1099
        %1103 = vset.pattern.permute.xlu0 7
        %1104 = vperm.xlu0 %1103, %v1009
        %v1105 = vpop.permute.xlu0 %1104
        %v1107 = vperm.slane %v1006, 7
        %v1108 = vperm.slane %v1007, 7
        %v1109 = vperm.slane %v1008, 7
        %v1110 = vmul.f32 %v1105, %v1107
        %v1111 = vmul.f32 %v1105, %v1108
        %v1112 = vmul.f32 %v1105, %v1109
        %v1113 = vadd.f32 %v1100, %v1110
        %v1114 = vadd.f32 %v1101, %v1111
        %v1115 = vadd.f32 %v1102, %v1112
        %1117 = vset.pattern.permute.xlu0 0
        %1118 = vperm.xlu0 %1117, %v1010
        %v1119 = vpop.permute.xlu0 %1118
        %v1121 = vadd.f32 %v1113, %v1119
        %v1122 = vadd.f32 %v1114, %v1119
        %v1123 = vadd.f32 %v1115, %v1119
        %v1124 = vmax.f32 %v1121, 0.0
        %v1125 = vmax.f32 %v1122, 0.0
        %v1126 = vmax.f32 %v1123, 0.0
        %1130 = vrot.lane.b32.xlu0 %v1124, 17
        %v1131 = vpop.permute.xlu0 %1130
        %1132 = vrot.lane.b32.xlu0 %v1125, 17
        %v1133 = vpop.permute.xlu0 %1132
        %1134 = vrot.lane.b32.xlu0 %v1126, 17
        %v1135 = vpop.permute.xlu0 %1134
        %v1136 = vsel %vm376, %v1131, %v1133
        %v1137 = vsel %vm376, %v1133, %v1135
        %1140 = vst [vmem:[%s367] sm:$0xff] %v1136
        %1141 = vst [vmem:[%s367 + $0x8] sm:$0xff] %v1137
        %s1142 = sand.u32 %s248, 1
        %s1143 = scalar_lea.sflag [#allocation5], %s1142
        %s1144 = sand.u32 %s248, 1
        %s1145 = smul.addr %s1144, 16
        %s1146 = scalar_lea.vmem [#allocation6], %s1145
        // Predicated region
        $region65: #{tpu_custom_call.1} parent=59 // pred_check
          %p1147 = pneg %p258
        $region66: #{tpu_custom_call.1} parent=59 // pred_check_branch
          %1149 = sbr.rel (%p1147) target = $region68
        $region67: #{tpu_custom_call.1} parent=59 // pred_region
          %1151 = vsyncadd %s1143, 0
          %s1152 = smul.addr %s25, 2
          %s1153 = smul.addr %s1152, 8
          %s1154 = scalar_lea.hbm %s10, %s1153
          %s1156 = sshll.u32 %s1146, 4
          %s1157 = int_to_ptr.vmem [resolvable:$true] %s1156
          %s1158 = sshll.u32 %s1154, 4
          %s1159 = int_to_ptr.hbm [resolvable:$true] %s1158
          %1161 = dma.vmem_to_hbm [thread:$0]  %s1157, 256, %s1159, %s1143
        $region68: #{tpu_custom_call.1} parent=59 // pred_fallthru
          _
      $region60: #{tpu_custom_call.1} parent=5 // pred_fallthru
        _
      %p1162 = scmp.le.s32.totalorder 2, %s20
      // Predicated region
      $region69: #{tpu_custom_call.1} parent=5 // pred_check
        %p1163 = pneg %p1162
      $region70: #{tpu_custom_call.1} parent=5 // pred_check_branch
        %1165 = sbr.rel (%p1163) target = $region72
      $region71: #{tpu_custom_call.1} parent=5 // pred_region
        %s1166 = ssub.s32 %s20, 2
        // Predicated region
        $region73: #{tpu_custom_call.1} parent=71 // pred_check
          %p1167 = pneg %p264
        $region74: #{tpu_custom_call.1} parent=71 // pred_check_branch
          %1169 = sbr.rel (%p1167) target = $region76
        $region75: #{tpu_custom_call.1} parent=71 // pred_region
          %s1170 = sand.u32 %s249, 1
          %s1171 = scalar_lea.sflag [#allocation5], %s1170
          %s1172 = sand.u32 %s249, 1
          %s1173 = smul.addr %s1172, 16
          %s1174 = scalar_lea.vmem [#allocation6], %s1173
          %1176 = dma.done %s1171, 256
        $region76: #{tpu_custom_call.1} parent=71 // pred_fallthru
          _
      $region72: #{tpu_custom_call.1} parent=5 // pred_fallthru
        _
    $region6: #{tpu_custom_call.1} parent=1 // loop_footer
      %s24 = sadd.s32 1, %s20
    $region7: #{tpu_custom_call.1} parent=1 // loop_footer_branch
      %19 = sbr.rel target = $region3
    $region8: #{tpu_custom_call.1} parent=1 // loop_exit
      _
    %1177 = vsyncpa [#allocation4], 1
    %s1178 = scalar_lea.sflag [#allocation4], 1
    %1179 = vsyncpa %s1178, 1
    %1180 = vsyncpa [#allocation5], 1
    %s1181 = scalar_lea.sflag [#allocation5], 1
    %1182 = vsyncpa %s1181, 1

</llo_original>
